<compile_context>
chip_gen: v7x
topology: tpu7x:2x2x1
jax: 0.10.0
libtpu: 0.0.40
codegen_flags: <defaults>
</compile_context>

<pallas_src>
import functools

import jax
import jax.numpy as jnp
from jax.experimental import pallas as pl
from jax.experimental.pallas import tpu as pltpu


def _softmax_lastdim(x, *, approx_recip):
    # x is f32. Explicit max/exp/sum, then reciprocal-multiply (EUP slot) instead of a divide.
    # approx only when the matmul path is already bf16.
    m = jnp.max(x, axis=-1, keepdims=True)
    p = jnp.exp(x - m)
    l = jnp.sum(p, axis=-1, keepdims=True)
    return p * pl.reciprocal(l, approx=approx_recip)


def _fuse_kernel(x12_ref, wqkv_ref, wout_ref, o_ref, *, heads, dim_head, compute_dtype):
    _, bt, n, dim = x12_ref.shape
    inner = heads * dim_head
    approx = jnp.dtype(compute_dtype) != jnp.dtype(jnp.float32)

    # Pre-transposed, resident weights: (dim, 3*inner) and (inner, dim); scale already folded
    # into the Q columns of wqkv (one-time wrapper-side prep).
    wqkv = wqkv_ref[...]
    wout = wout_ref[...]

    # ---- one fused QKV projection for both streams (single big MXU matmul) -----------------
    x_all = x12_ref[...].reshape(2 * bt * n, dim)
    qkv = jnp.dot(x_all, wqkv, preferred_element_type=jnp.float32)      # (2*bt*n, 3*inner) f32
    qkv = qkv.reshape(2, bt, n, 3 * inner)
    qkv1, qkv2 = qkv[0], qkv[1]                                         # (bt, n, 3*inner) each

    # ---- head- & stream-fused attention core ------------------------------------------------
    # Pairing matches the reference module exactly:
    #   slot 2h   -> (q1_h, k2_h, v1_h)  => out12_h   (attn(q1·k2) applied to v1)
    #   slot 2h+1 -> (q2_h, k1_h, v2_h)  => out21_h   (attn(q2·k1) applied to v2)
    q_parts, k_parts, v_parts = [], [], []
    for h in range(heads):  # heads is small & static -> trace-time only (no compute here)
        q_sl = slice(h * dim_head, (h + 1) * dim_head)
        k_sl = slice(inner + h * dim_head, inner + (h + 1) * dim_head)
        v_sl = slice(2 * inner + h * dim_head, 2 * inner + (h + 1) * dim_head)
        q_parts += [qkv1[:, :, q_sl], qkv2[:, :, q_sl]]
        k_parts += [qkv2[:, :, k_sl], qkv1[:, :, k_sl]]
        v_parts += [qkv1[:, :, v_sl], qkv2[:, :, v_sl]]
    qs = jnp.concatenate(q_parts, axis=0).astype(compute_dtype)         # (2*heads*bt, n, dh)
    ks = jnp.concatenate(k_parts, axis=0).astype(compute_dtype)
    vs = jnp.concatenate(v_parts, axis=0).astype(compute_dtype)

    # One batched scores matmul, one softmax slab, one batched PV matmul.
    dots = jnp.einsum('bqd,bkd->bqk', qs, ks, preferred_element_type=jnp.float32)
    attn = _softmax_lastdim(dots, approx_recip=approx).astype(compute_dtype)
    out = jnp.einsum('bqk,bkd->bqd', attn, vs, preferred_element_type=jnp.float32)

    # ---- projected difference: y = sum_h (out21_h - out12_h) @ W_out_h^T (bias cancels) -----
    y = jnp.zeros((bt * n, dim), jnp.float32)
    for h in range(heads):
        out12_h = out[(2 * h) * bt:(2 * h + 1) * bt]
        out21_h = out[(2 * h + 1) * bt:(2 * h + 2) * bt]
        diff_h = (out21_h - out12_h).reshape(bt * n, dim_head).astype(compute_dtype)
        y = y + jnp.dot(diff_h, wout[h * dim_head:(h + 1) * dim_head, :],
                        preferred_element_type=jnp.float32)

    o_ref[...] = y.reshape(bt, n, dim).astype(o_ref.dtype)


def prepare_scale_feat_fuse_weights(w_qkv, w_out, *, heads, dim_head, compute_dtype):
    """One-time weight prep (hoist out of the hot path / constant-folds under jit)."""
    inner = heads * dim_head
    scale = dim_head ** (-0.5)
    w_qkv_t = w_qkv.T.astype(jnp.float32)               # (dim, 3*inner), MXU-friendly layout
    w_qkv_t = w_qkv_t.at[:, :inner].multiply(scale)     # fold softmax scale into the Q columns
    w_out_t = w_out.T                                   # (inner, dim)
    return w_qkv_t.astype(compute_dtype), w_out_t.astype(compute_dtype)


def _vmem_bytes_estimate(block_b, n, dim, heads, dim_head, compute_dtype, out_dtype):
    cs = jnp.dtype(compute_dtype).itemsize
    osz = jnp.dtype(out_dtype).itemsize
    inner = heads * dim_head
    rows = block_b * n
    pipe = 2 * (2 * rows * dim * cs)                     # x12 block (double-buffered)
    pipe += 2 * (rows * dim * osz)                       # out block (double-buffered)
    pipe += 2 * (dim * 3 * inner + inner * dim) * cs     # resident weights (2 buffers each)
    tmp = 2 * rows * 3 * inner * 4                       # f32 qkv
    tmp += 3 * 2 * heads * rows * dim_head * cs          # q / k / v paired slabs
    tmp += 2 * heads * rows * n * (4 + cs)               # f32 scores + compute-dtype attn
    tmp += 2 * heads * rows * dim_head * 4               # f32 attention output
    tmp += rows * dim * 4                                # f32 projected accumulator
    return pipe + tmp


_VMEM_BUDGET = 32 << 20   # conservative sizing budget (v7x has only 64 MiB physical VMEM)


def _pick_block_b(b, n, dim, heads, dim_head, compute_dtype, out_dtype, target_rows=512):
    # Largest divisor of b with ~target_rows rows per grid step, but keep the grid at >= 2
    # (prefer >= 4) steps so v7x megacore sharding + DMA/compute pipelining actually engage,
    # and keep the estimated per-step VMEM footprint inside budget.
    bb = max(1, min(b, max(1, target_rows // max(n, 1))))
    if b >= 2:
        bb = min(bb, b // 2)
    if b >= 8:
        bb = min(bb, b // 4)
    bb = max(bb, 1)
    while b % bb:
        bb -= 1
    while bb > 1 and _vmem_bytes_estimate(bb, n, dim, heads, dim_head,
                                          compute_dtype, out_dtype) > _VMEM_BUDGET:
        bb -= 1
        while b % bb:
            bb -= 1
    return bb


def scale_feat_fuse(x1, x2, w_qkv, w_out, b_out=None, *, heads, dim_head,
                    block_b=None, compute_dtype=jnp.bfloat16):
    """ScaleFeatFuse forward (eval mode).

    b_out is accepted for API parity with the PyTorch module, but the output-projection
    bias cancels exactly in (y21 - y12), so it never reaches the kernel.
    """
    del b_out  # cancels in the difference
    b, n, dim = x1.shape
    inner = heads * dim_head
    out_dtype = x1.dtype

    # One-time wrapper-side prep (constant-folds under jit with static weights).
    w_qkv_c, w_out_c = prepare_scale_feat_fuse_weights(
        w_qkv, w_out, heads=heads, dim_head=dim_head, compute_dtype=compute_dtype)

    # Stack the two streams so the kernel runs a single QKV matmul per grid step; the cast
    # also halves the HBM->VMEM DMA bytes when compute_dtype is bf16.
    x12 = jnp.stack([x1, x2], axis=0).astype(compute_dtype)   # (2, b, n, dim)

    if block_b is None:
        block_b = _pick_block_b(b, n, dim, heads, dim_head, compute_dtype, out_dtype)
    assert b % block_b == 0, "block_b must divide the batch size"
    grid = (b // block_b,)

    est = _vmem_bytes_estimate(block_b, n, dim, heads, dim_head, compute_dtype, out_dtype)
    vmem_limit = int(min(max(2 * est, 32 << 20), 48 << 20))

    kernel = functools.partial(_fuse_kernel, heads=heads, dim_head=dim_head,
                               compute_dtype=compute_dtype)

    return pl.pallas_call(
        kernel,
        out_shape=jax.ShapeDtypeStruct((b, n, dim), out_dtype),
        grid_spec=pltpu.PrefetchScalarGridSpec(
            num_scalar_prefetch=0,
            grid=grid,
            in_specs=[
                pl.BlockSpec((2, block_b, n, dim), lambda i: (0, i, 0, 0)),  # stacked x1/x2
                pl.BlockSpec((dim, 3 * inner), lambda i: (0, 0)),            # w_qkv^T (resident)
                pl.BlockSpec((inner, dim), lambda i: (0, 0)),                # w_out^T (resident)
            ],
            out_specs=pl.BlockSpec((block_b, n, dim), lambda i: (i, 0, 0)),
        ),
        compiler_params=pltpu.CompilerParams(
            dimension_semantics=("parallel",),
            vmem_limit_bytes=vmem_limit),
    )(x12, w_qkv_c, w_out_c)


def _reference(x1, x2, w_qkv, w_out, b_out, *, heads, dim_head):
    # Pure-JAX reference mirroring the PyTorch forward (eval mode).
    b, n, dim = x1.shape
    inner = heads * dim_head
    scale = dim_head ** (-0.5)

    def split_heads(t):  # (b, n, inner) -> (b, h, n, d)
        return t.reshape(b, n, heads, dim_head).transpose(0, 2, 1, 3)

    qkv1 = x1 @ w_qkv.T
    qkv2 = x2 @ w_qkv.T
    q1, k1, v1 = map(split_heads, jnp.split(qkv1, 3, axis=-1))
    q2, k2, v2 = map(split_heads, jnp.split(qkv2, 3, axis=-1))

    dots12 = jnp.einsum('bhid,bhjd->bhij', q1, k2) * scale
    dots21 = jnp.einsum('bhid,bhjd->bhij', q2, k1) * scale
    attn12 = jax.nn.softmax(dots12, axis=-1)
    attn21 = jax.nn.softmax(dots21, axis=-1)
    out12 = jnp.einsum('bhij,bhjd->bhid', attn12, v1)
    out21 = jnp.einsum('bhij,bhjd->bhid', attn21, v2)

    def merge(t):  # (b, h, n, d) -> (b, n, inner)
        return t.transpose(0, 2, 1, 3).reshape(b, n, inner)

    y12 = merge(out12) @ w_out.T + b_out
    y21 = merge(out21) @ w_out.T + b_out
    return y21 - y12


if __name__ == "__main__":
    # Small shapes consistent with the module.
    B, N, DIM = 2, 8, 32
    HEADS, DIM_HEAD = 4, 8
    INNER = HEADS * DIM_HEAD

    key = jax.random.PRNGKey(0)
    k1, k2, k3, k4, k5 = jax.random.split(key, 5)

    x1 = jax.random.normal(k1, (B, N, DIM), dtype=jnp.float32)
    x2 = jax.random.normal(k2, (B, N, DIM), dtype=jnp.float32)

    # Deterministic parameter init (PyTorch Linear weight layout: (out, in)).
    w_qkv = jax.random.normal(k3, (3 * INNER, DIM), dtype=jnp.float32) * 0.05
    w_out = jax.random.normal(k4, (DIM, INNER), dtype=jnp.float32) * 0.05
    b_out = jax.random.normal(k5, (DIM,), dtype=jnp.float32) * 0.01

    ref = _reference(x1, x2, w_qkv, w_out, b_out, heads=HEADS, dim_head=DIM_HEAD)

    # Default path: bf16 matmul operands (2x MXU throughput, half input DMA bytes); scores,
    # softmax and accumulation stay f32, so only operand-rounding error remains. Note the
    # approx reciprocal means softmax rows sum to 1 only to ~1e-3 relative (intentional).
    out_bf16 = scale_feat_fuse(x1, x2, w_qkv, w_out, b_out,
                               heads=HEADS, dim_head=DIM_HEAD)
    out_bf16 = jax.block_until_ready(out_bf16)
    assert out_bf16.shape == (B, N, DIM)
    assert jnp.allclose(out_bf16, ref, atol=2e-2, rtol=2e-2), "bf16 mismatch vs reference"

    # f32 operand path: tight tolerance against the reference.
    out_f32 = scale_feat_fuse(x1, x2, w_qkv, w_out, b_out,
                              heads=HEADS, dim_head=DIM_HEAD,
                              compute_dtype=jnp.float32)
    out_f32 = jax.block_until_ready(out_f32)
    assert jnp.allclose(out_f32, ref, atol=1e-5, rtol=1e-5), "f32 mismatch vs reference"

    print("KERNEL_OK")
</pallas_src>

<mosaic_0001>
module attributes {stable_mosaic.version = 11 : i64} {
  func.func @_fuse_kernel(%arg0: i32, %arg1: memref<2x1x8x32xbf16, #tpu.memory_space<vmem>>, %arg2: memref<32x96xbf16, #tpu.memory_space<vmem>>, %arg3: memref<32x32xbf16, #tpu.memory_space<vmem>>, %arg4: memref<1x8x32xf32, #tpu.memory_space<vmem>>) attributes {dimension_semantics = [#tpu.dimension_semantics<parallel>], iteration_bounds = array<i64: 2>, scalar_prefetch = 0 : i64, scratch_operands = 0 : i64, tpu.core_type = #tpu.core_type<tc>, window_params = [{transform_indices = @transform_0, window_bounds = array<i64: 2, 1, 8, 32>}, {pipeline_mode = #tpu.pipeline_mode<synchronous>, transform_indices = @transform_1, window_bounds = array<i64: 32, 96>}, {pipeline_mode = #tpu.pipeline_mode<synchronous>, transform_indices = @transform_2, window_bounds = array<i64: 32, 32>}, {transform_indices = @transform_3, window_bounds = array<i64: 1, 8, 32>}]} {
    %c0 = arith.constant 0 : index
    %c0_0 = arith.constant 0 : index
    %0 = vector.load %arg2[%c0, %c0_0] : memref<32x96xbf16, #tpu.memory_space<vmem>>, vector<32x96xbf16>
    %c0_1 = arith.constant 0 : index
    %c0_2 = arith.constant 0 : index
    %1 = vector.load %arg3[%c0_1, %c0_2] : memref<32x32xbf16, #tpu.memory_space<vmem>>, vector<32x32xbf16>
    %c0_3 = arith.constant 0 : index
    %c0_4 = arith.constant 0 : index
    %c0_5 = arith.constant 0 : index
    %c0_6 = arith.constant 0 : index
    %2 = vector.load %arg1[%c0_3, %c0_4, %c0_5, %c0_6] : memref<2x1x8x32xbf16, #tpu.memory_space<vmem>>, vector<2x1x8x32xbf16>
    %3 = vector.shape_cast %2 : vector<2x1x8x32xbf16> to vector<16x32xbf16>
    %cst = arith.constant dense<0.000000e+00> : vector<16x96xf32>
    %4 = tpu.matmul %3, %0, %cst {dimension_numbers = #tpu.dot_dimension_numbers<[1], [0], [0], [1], [0, 0, 1, 1], [], []>} : vector<16x32xbf16>, vector<32x96xbf16>, vector<16x96xf32> -> vector<16x96xf32>
    %5 = vector.shape_cast %4 : vector<16x96xf32> to vector<2x1x8x96xf32>
    %6 = vector.extract_strided_slice %5 {offsets = [0, 0, 0, 0], sizes = [1, 1, 8, 96], strides = [1, 1, 1, 1]} : vector<2x1x8x96xf32> to vector<1x1x8x96xf32>
    %7 = vector.shape_cast %6 : vector<1x1x8x96xf32> to vector<1x8x96xf32>
    %8 = vector.extract_strided_slice %5 {offsets = [1, 0, 0, 0], sizes = [1, 1, 8, 96], strides = [1, 1, 1, 1]} : vector<2x1x8x96xf32> to vector<1x1x8x96xf32>
    %9 = vector.shape_cast %8 : vector<1x1x8x96xf32> to vector<1x8x96xf32>
    %10 = vector.extract_strided_slice %7 {offsets = [0, 0, 0], sizes = [1, 8, 8], strides = [1, 1, 1]} : vector<1x8x96xf32> to vector<1x8x8xf32>
    %11 = vector.extract_strided_slice %9 {offsets = [0, 0, 0], sizes = [1, 8, 8], strides = [1, 1, 1]} : vector<1x8x96xf32> to vector<1x8x8xf32>
    %12 = vector.extract_strided_slice %9 {offsets = [0, 0, 32], sizes = [1, 8, 8], strides = [1, 1, 1]} : vector<1x8x96xf32> to vector<1x8x8xf32>
    %13 = vector.extract_strided_slice %7 {offsets = [0, 0, 32], sizes = [1, 8, 8], strides = [1, 1, 1]} : vector<1x8x96xf32> to vector<1x8x8xf32>
    %14 = vector.extract_strided_slice %7 {offsets = [0, 0, 64], sizes = [1, 8, 8], strides = [1, 1, 1]} : vector<1x8x96xf32> to vector<1x8x8xf32>
    %15 = vector.extract_strided_slice %9 {offsets = [0, 0, 64], sizes = [1, 8, 8], strides = [1, 1, 1]} : vector<1x8x96xf32> to vector<1x8x8xf32>
    %16 = vector.extract_strided_slice %7 {offsets = [0, 0, 8], sizes = [1, 8, 8], strides = [1, 1, 1]} : vector<1x8x96xf32> to vector<1x8x8xf32>
    %17 = vector.extract_strided_slice %9 {offsets = [0, 0, 8], sizes = [1, 8, 8], strides = [1, 1, 1]} : vector<1x8x96xf32> to vector<1x8x8xf32>
    %18 = vector.extract_strided_slice %9 {offsets = [0, 0, 40], sizes = [1, 8, 8], strides = [1, 1, 1]} : vector<1x8x96xf32> to vector<1x8x8xf32>
    %19 = vector.extract_strided_slice %7 {offsets = [0, 0, 40], sizes = [1, 8, 8], strides = [1, 1, 1]} : vector<1x8x96xf32> to vector<1x8x8xf32>
    %20 = vector.extract_strided_slice %7 {offsets = [0, 0, 72], sizes = [1, 8, 8], strides = [1, 1, 1]} : vector<1x8x96xf32> to vector<1x8x8xf32>
    %21 = vector.extract_strided_slice %9 {offsets = [0, 0, 72], sizes = [1, 8, 8], strides = [1, 1, 1]} : vector<1x8x96xf32> to vector<1x8x8xf32>
    %22 = vector.extract_strided_slice %7 {offsets = [0, 0, 16], sizes = [1, 8, 8], strides = [1, 1, 1]} : vector<1x8x96xf32> to vector<1x8x8xf32>
    %23 = vector.extract_strided_slice %9 {offsets = [0, 0, 16], sizes = [1, 8, 8], strides = [1, 1, 1]} : vector<1x8x96xf32> to vector<1x8x8xf32>
    %24 = vector.extract_strided_slice %9 {offsets = [0, 0, 48], sizes = [1, 8, 8], strides = [1, 1, 1]} : vector<1x8x96xf32> to vector<1x8x8xf32>
    %25 = vector.extract_strided_slice %7 {offsets = [0, 0, 48], sizes = [1, 8, 8], strides = [1, 1, 1]} : vector<1x8x96xf32> to vector<1x8x8xf32>
    %26 = vector.extract_strided_slice %7 {offsets = [0, 0, 80], sizes = [1, 8, 8], strides = [1, 1, 1]} : vector<1x8x96xf32> to vector<1x8x8xf32>
    %27 = vector.extract_strided_slice %9 {offsets = [0, 0, 80], sizes = [1, 8, 8], strides = [1, 1, 1]} : vector<1x8x96xf32> to vector<1x8x8xf32>
    %28 = vector.extract_strided_slice %7 {offsets = [0, 0, 24], sizes = [1, 8, 8], strides = [1, 1, 1]} : vector<1x8x96xf32> to vector<1x8x8xf32>
    %29 = vector.extract_strided_slice %9 {offsets = [0, 0, 24], sizes = [1, 8, 8], strides = [1, 1, 1]} : vector<1x8x96xf32> to vector<1x8x8xf32>
    %30 = vector.extract_strided_slice %9 {offsets = [0, 0, 56], sizes = [1, 8, 8], strides = [1, 1, 1]} : vector<1x8x96xf32> to vector<1x8x8xf32>
    %31 = vector.extract_strided_slice %7 {offsets = [0, 0, 56], sizes = [1, 8, 8], strides = [1, 1, 1]} : vector<1x8x96xf32> to vector<1x8x8xf32>
    %32 = vector.extract_strided_slice %7 {offsets = [0, 0, 88], sizes = [1, 8, 8], strides = [1, 1, 1]} : vector<1x8x96xf32> to vector<1x8x8xf32>
    %33 = vector.extract_strided_slice %9 {offsets = [0, 0, 88], sizes = [1, 8, 8], strides = [1, 1, 1]} : vector<1x8x96xf32> to vector<1x8x8xf32>
    %34 = tpu.concatenate %10, %11, %16, %17, %22, %23, %28, %29 in 0 : vector<1x8x8xf32>, vector<1x8x8xf32>, vector<1x8x8xf32>, vector<1x8x8xf32>, vector<1x8x8xf32>, vector<1x8x8xf32>, vector<1x8x8xf32>, vector<1x8x8xf32> -> vector<8x8x8xf32>
    %35 = arith.truncf %34 : vector<8x8x8xf32> to vector<8x8x8xbf16>
    %36 = tpu.concatenate %12, %13, %18, %19, %24, %25, %30, %31 in 0 : vector<1x8x8xf32>, vector<1x8x8xf32>, vector<1x8x8xf32>, vector<1x8x8xf32>, vector<1x8x8xf32>, vector<1x8x8xf32>, vector<1x8x8xf32>, vector<1x8x8xf32> -> vector<8x8x8xf32>
    %37 = arith.truncf %36 : vector<8x8x8xf32> to vector<8x8x8xbf16>
    %38 = tpu.concatenate %14, %15, %20, %21, %26, %27, %32, %33 in 0 : vector<1x8x8xf32>, vector<1x8x8xf32>, vector<1x8x8xf32>, vector<1x8x8xf32>, vector<1x8x8xf32>, vector<1x8x8xf32>, vector<1x8x8xf32>, vector<1x8x8xf32> -> vector<8x8x8xf32>
    %39 = arith.truncf %38 : vector<8x8x8xf32> to vector<8x8x8xbf16>
    "tpu.trace_start"() <{level = 10 : i32, message = "bqd,bkd->bqk"}> : () -> ()
    %cst_7 = arith.constant dense<0.000000e+00> : vector<8x8x8xf32>
    %40 = tpu.matmul %35, %37, %cst_7 {dimension_numbers = #tpu.dot_dimension_numbers<[2], [2], [1], [1], [0, 0, 0, 1, 1, 1], [0], [0]>} : vector<8x8x8xbf16>, vector<8x8x8xbf16>, vector<8x8x8xf32> -> vector<8x8x8xf32>
    "tpu.trace_stop"() : () -> ()
    %cst_8 = arith.constant dense<0xFF800000> : vector<8x8xf32>
    %41 = vector.multi_reduction <maximumf>, %40, %cst_8 [2] : vector<8x8x8xf32> to vector<8x8xf32>
    %42 = vector.shape_cast %41 : vector<8x8xf32> to vector<8x8x1xf32>
    %43 = vector.broadcast %42 : vector<8x8x1xf32> to vector<8x8x8xf32>
    %44 = arith.subf %40, %43 : vector<8x8x8xf32>
    %45 = math.exp %44 : vector<8x8x8xf32>
    %cst_9 = arith.constant dense<0.000000e+00> : vector<8x8xf32>
    %46 = vector.multi_reduction <add>, %45, %cst_9 [2] : vector<8x8x8xf32> to vector<8x8xf32>
    %47 = vector.shape_cast %46 : vector<8x8xf32> to vector<8x8x1xf32>
    %48 = tpu.reciprocal %47 {approx = true} : vector<8x8x1xf32> -> vector<8x8x1xf32>
    %49 = vector.broadcast %48 : vector<8x8x1xf32> to vector<8x8x8xf32>
    %50 = arith.mulf %45, %49 : vector<8x8x8xf32>
    %51 = arith.truncf %50 : vector<8x8x8xf32> to vector<8x8x8xbf16>
    "tpu.trace_start"() <{level = 10 : i32, message = "bqk,bkd->bqd"}> : () -> ()
    %cst_10 = arith.constant dense<0.000000e+00> : vector<8x8x8xf32>
    %52 = tpu.matmul %51, %39, %cst_10 {dimension_numbers = #tpu.dot_dimension_numbers<[2], [1], [1], [2], [0, 0, 0, 1, 1, 2], [0], [0]>} : vector<8x8x8xbf16>, vector<8x8x8xbf16>, vector<8x8x8xf32> -> vector<8x8x8xf32>
    %cst_11 = arith.constant 0.000000e+00 : f32
    "tpu.trace_stop"() : () -> ()
    %53 = vector.broadcast %cst_11 : f32 to vector<8x32xf32>
    %54 = vector.extract_strided_slice %52 {offsets = [0, 0, 0], sizes = [1, 8, 8], strides = [1, 1, 1]} : vector<8x8x8xf32> to vector<1x8x8xf32>
    %55 = vector.extract_strided_slice %52 {offsets = [1, 0, 0], sizes = [1, 8, 8], strides = [1, 1, 1]} : vector<8x8x8xf32> to vector<1x8x8xf32>
    %56 = arith.subf %55, %54 : vector<1x8x8xf32>
    %57 = vector.shape_cast %56 : vector<1x8x8xf32> to vector<8x8xf32>
    %58 = arith.truncf %57 : vector<8x8xf32> to vector<8x8xbf16>
    %59 = vector.extract_strided_slice %1 {offsets = [0, 0], sizes = [8, 32], strides = [1, 1]} : vector<32x32xbf16> to vector<8x32xbf16>
    %cst_12 = arith.constant dense<0.000000e+00> : vector<8x32xf32>
    %60 = tpu.matmul %58, %59, %cst_12 {dimension_numbers = #tpu.dot_dimension_numbers<[1], [0], [0], [1], [0, 0, 1, 1], [], []>} : vector<8x8xbf16>, vector<8x32xbf16>, vector<8x32xf32> -> vector<8x32xf32>
    %61 = arith.addf %53, %60 : vector<8x32xf32>
    %62 = vector.extract_strided_slice %52 {offsets = [2, 0, 0], sizes = [1, 8, 8], strides = [1, 1, 1]} : vector<8x8x8xf32> to vector<1x8x8xf32>
    %63 = vector.extract_strided_slice %52 {offsets = [3, 0, 0], sizes = [1, 8, 8], strides = [1, 1, 1]} : vector<8x8x8xf32> to vector<1x8x8xf32>
    %64 = arith.subf %63, %62 : vector<1x8x8xf32>
    %65 = vector.shape_cast %64 : vector<1x8x8xf32> to vector<8x8xf32>
    %66 = arith.truncf %65 : vector<8x8xf32> to vector<8x8xbf16>
    %67 = vector.extract_strided_slice %1 {offsets = [8, 0], sizes = [8, 32], strides = [1, 1]} : vector<32x32xbf16> to vector<8x32xbf16>
    %cst_13 = arith.constant dense<0.000000e+00> : vector<8x32xf32>
    %68 = tpu.matmul %66, %67, %cst_13 {dimension_numbers = #tpu.dot_dimension_numbers<[1], [0], [0], [1], [0, 0, 1, 1], [], []>} : vector<8x8xbf16>, vector<8x32xbf16>, vector<8x32xf32> -> vector<8x32xf32>
    %69 = arith.addf %61, %68 : vector<8x32xf32>
    %70 = vector.extract_strided_slice %52 {offsets = [4, 0, 0], sizes = [1, 8, 8], strides = [1, 1, 1]} : vector<8x8x8xf32> to vector<1x8x8xf32>
    %71 = vector.extract_strided_slice %52 {offsets = [5, 0, 0], sizes = [1, 8, 8], strides = [1, 1, 1]} : vector<8x8x8xf32> to vector<1x8x8xf32>
    %72 = arith.subf %71, %70 : vector<1x8x8xf32>
    %73 = vector.shape_cast %72 : vector<1x8x8xf32> to vector<8x8xf32>
    %74 = arith.truncf %73 : vector<8x8xf32> to vector<8x8xbf16>
    %75 = vector.extract_strided_slice %1 {offsets = [16, 0], sizes = [8, 32], strides = [1, 1]} : vector<32x32xbf16> to vector<8x32xbf16>
    %cst_14 = arith.constant dense<0.000000e+00> : vector<8x32xf32>
    %76 = tpu.matmul %74, %75, %cst_14 {dimension_numbers = #tpu.dot_dimension_numbers<[1], [0], [0], [1], [0, 0, 1, 1], [], []>} : vector<8x8xbf16>, vector<8x32xbf16>, vector<8x32xf32> -> vector<8x32xf32>
    %77 = arith.addf %69, %76 : vector<8x32xf32>
    %78 = vector.extract_strided_slice %52 {offsets = [6, 0, 0], sizes = [1, 8, 8], strides = [1, 1, 1]} : vector<8x8x8xf32> to vector<1x8x8xf32>
    %79 = vector.extract_strided_slice %52 {offsets = [7, 0, 0], sizes = [1, 8, 8], strides = [1, 1, 1]} : vector<8x8x8xf32> to vector<1x8x8xf32>
    %80 = arith.subf %79, %78 : vector<1x8x8xf32>
    %81 = vector.shape_cast %80 : vector<1x8x8xf32> to vector<8x8xf32>
    %82 = arith.truncf %81 : vector<8x8xf32> to vector<8x8xbf16>
    %83 = vector.extract_strided_slice %1 {offsets = [24, 0], sizes = [8, 32], strides = [1, 1]} : vector<32x32xbf16> to vector<8x32xbf16>
    %cst_15 = arith.constant dense<0.000000e+00> : vector<8x32xf32>
    %84 = tpu.matmul %82, %83, %cst_15 {dimension_numbers = #tpu.dot_dimension_numbers<[1], [0], [0], [1], [0, 0, 1, 1], [], []>} : vector<8x8xbf16>, vector<8x32xbf16>, vector<8x32xf32> -> vector<8x32xf32>
    %85 = arith.addf %77, %84 : vector<8x32xf32>
    %86 = vector.shape_cast %85 : vector<8x32xf32> to vector<1x8x32xf32>
    %c0_16 = arith.constant 0 : index
    %c0_17 = arith.constant 0 : index
    %c0_18 = arith.constant 0 : index
    %87 = vector.load %arg4[%c0_16, %c0_17, %c0_18] : memref<1x8x32xf32, #tpu.memory_space<vmem>>, vector<1x8x32xf32>
    tpu.vector_store %arg4[%c0_16, %c0_17, %c0_18], %86 {strides = array<i32>} : memref<1x8x32xf32, #tpu.memory_space<vmem>>, vector<1x8x32xf32>,
    return
  }
  func.func @transform_0(%arg0: i32) -> (i32, i32, i32, i32) {
    %c0_i32 = arith.constant 0 : i32
    %c0_i32_0 = arith.constant 0 : i32
    %c0_i32_1 = arith.constant 0 : i32
    %c0_i32_2 = arith.constant 0 : i32
    return %c0_i32, %arg0, %c0_i32_0, %c0_i32_1 : i32, i32, i32, i32
  }
  func.func @transform_1(%arg0: i32) -> (i32, i32) {
    %c0_i32 = arith.constant 0 : i32
    %c0_i32_0 = arith.constant 0 : i32
    %c0_i32_1 = arith.constant 0 : i32
    return %c0_i32, %c0_i32_0 : i32, i32
  }
  func.func @transform_2(%arg0: i32) -> (i32, i32) {
    %c0_i32 = arith.constant 0 : i32
    %c0_i32_0 = arith.constant 0 : i32
    %c0_i32_1 = arith.constant 0 : i32
    return %c0_i32, %c0_i32_0 : i32, i32
  }
  func.func @transform_3(%arg0: i32) -> (i32, i32, i32) {
    %c0_i32 = arith.constant 0 : i32
    %c0_i32_0 = arith.constant 0 : i32
    %c0_i32_1 = arith.constant 0 : i32
    return %arg0, %c0_i32, %c0_i32_0 : i32, i32, i32
  }
}

</mosaic_0001>

<llo_original>
// kernel: tpu_custom_call.1
$region0: #{tpu_custom_call.1}
  #allocation0 [shape = 'u32[]', space=smem, size = 0x4, offset = 0x4, fixed_abs, tag = 'smem constant byte address 0x4 - core index']
  #allocation1 [shape = 'u32[144,128]{1,0:T(1,128)}', space=vmem, size = 0x12000, scoped, tag = 'internal scratch']
  %s0 = inlined_call_operand.hbm [shape: bf16[2,2,8,32], index: 0, kind: input, shape index: {}]
  %s1 = inlined_call_operand.hbm [shape: bf16[32,96], index: 1, kind: input, shape index: {}]
  %s2 = inlined_call_operand.hbm [shape: bf16[32,32], index: 2, kind: input, shape index: {}]
  %s3 = inlined_call_operand.hbm [shape: f32[2,8,32], index: 3, kind: output, shape index: {}]
  %s4 = sld [smem:[#allocation0]]
  $region57: #{tpu_custom_call.1} parent=0
    _
  %s6 = ssub.s32 1, %s4
  %s7 = scalar_select 0, %s6, %s4
  $region1: #{tpu_custom_call.1} parent=0
    #allocation2 [shape = 'u8[8192]{0}', space=vmem, size = 0x2000, scoped, tag = 'input window, operand 0']
    #allocation3 [shape = 's32[2]{0}', space=sflag, size = 0x8, scoped, tag = 'scoped memory for tpu_custom_call.1']
    #allocation4 [shape = 's32[2]{0}', space=sflag, size = 0x8, scoped, tag = 'scoped memory for tpu_custom_call.1']
    #allocation5 [shape = 'u8[8192]{0}', space=vmem, size = 0x2000, scoped, tag = 'input window, operand 1, single buffered']
    #allocation6 [shape = 's32[1]{0}', space=sflag, size = 0x4, scoped, tag = 'scoped memory for tpu_custom_call.1']
    #allocation7 [shape = 'u8[8192]{0}', space=vmem, size = 0x2000, scoped, tag = 'input window, operand 2, single buffered']
    #allocation8 [shape = 'u8[8192]{0}', space=vmem, size = 0x2000, scoped, tag = 'output window, operand 0']
    %8 = vsyncpa [#allocation3], 0
    %s9 = scalar_lea.sflag [#allocation3], 1
    %10 = vsyncpa %s9, 0
    %11 = vsyncpa [#allocation6], 0
    %12 = vsyncpa [#allocation4], 0
    %s13 = scalar_lea.sflag [#allocation4], 1
    %14 = vsyncpa %s13, 0
    loop: start=0, step=1, limit=4
    $region2: #{tpu_custom_call.1} parent=1 // loop_pre_header
      _
    $region3: #{tpu_custom_call.1} parent=1 // loop_header
      %s16 = sphi 0, %s20
      %p17 = scmp.ge.s32.totalorder %s16, 4
      %s26 = sphi 0, %s28
      %s29 = sphi 0, %s26
      %s30 = sphi 0, %s29
      %s46 = sphi 0, %s30
      %s50 = sphi 0, %s50
      %s52 = sphi 0, %s50
      %s53 = sphi 0, %s52
      %s67 = sphi 0, %s53
      %s71 = sphi 0, %s71
      %s73 = sphi 0, %s71
      %s74 = sphi 0, %s73
      %s88 = sphi 0, %s74
      %s94 = sphi 0, %s96
      %s97 = sphi 0, %s94
      %s98 = sphi 0, %s97
      %s114 = sphi 0, %s98
    $region4: #{tpu_custom_call.1} parent=1 // loop_header_branch
      %19 = sbr.rel (%p17) target = $region8
    $region5: #{tpu_custom_call.1} parent=1 // loop_body
      %s21 = ssub.s32 %s16, 1
      %s22 = ssub.s32 %s16, 2
      %s23 = sadd.s32 %s16, 1
      %s24 = ssub.s32 %s16, %s23
      %p25 = scmp.eq.s32.totalorder %s24, 0
      %s27 = sadd.s32 %s26, 1
      %s28 = scalar_select %p25, %s26, %s27
      %p31 = pneg %p25
      %p32 = scmp.eq.s32.totalorder %s16, 1
      %p33 = por %p31, %p32
      %p34 = scmp.ne.s32.totalorder %s26, %s29
      %p35 = scmp.eq.s32.totalorder %s16, 0
      %p36 = por %p34, %p35
      %p37 = scmp.ne.s32.totalorder %s26, %s29
      %p38 = scmp.eq.s32.totalorder %s21, 1
      %p39 = por %p37, %p38
      %p40 = scmp.ne.s32.totalorder %s29, %s30
      %p41 = scmp.eq.s32.totalorder %s21, 0
      %p42 = por %p40, %p41
      %p43 = scmp.ne.s32.totalorder %s29, %s30
      %p44 = scmp.eq.s32.totalorder %s22, 1
      %p45 = por %p43, %p44
      %p47 = scmp.ne.s32.totalorder %s30, %s46
      %p48 = scmp.eq.s32.totalorder %s22, 0
      %p49 = por %p47, %p48
      %s51 = sadd.s32 %s50, 1
      %p54 = scmp.eq.s32.totalorder %s16, 1
      %p55 = scmp.ne.s32.totalorder %s50, %s52
      %p56 = scmp.eq.s32.totalorder %s16, 0
      %p57 = por %p55, %p56
      %p58 = scmp.ne.s32.totalorder %s50, %s52
      %p59 = scmp.eq.s32.totalorder %s21, 1
      %p60 = por %p58, %p59
      %p61 = scmp.ne.s32.totalorder %s52, %s53
      %p62 = scmp.eq.s32.totalorder %s21, 0
      %p63 = por %p61, %p62
      %p64 = scmp.ne.s32.totalorder %s52, %s53
      %p65 = scmp.eq.s32.totalorder %s22, 1
      %p66 = por %p64, %p65
      %p68 = scmp.ne.s32.totalorder %s53, %s67
      %p69 = scmp.eq.s32.totalorder %s22, 0
      %p70 = por %p68, %p69
      %s72 = sadd.s32 %s71, 1
      %p75 = scmp.eq.s32.totalorder %s16, 1
      %p76 = scmp.ne.s32.totalorder %s71, %s73
      %p77 = scmp.eq.s32.totalorder %s16, 0
      %p78 = por %p76, %p77
      %p79 = scmp.ne.s32.totalorder %s71, %s73
      %p80 = scmp.eq.s32.totalorder %s21, 1
      %p81 = por %p79, %p80
      %p82 = scmp.ne.s32.totalorder %s73, %s74
      %p83 = scmp.eq.s32.totalorder %s21, 0
      %p84 = por %p82, %p83
      %p85 = scmp.ne.s32.totalorder %s73, %s74
      %p86 = scmp.eq.s32.totalorder %s22, 1
      %p87 = por %p85, %p86
      %p89 = scmp.ne.s32.totalorder %s74, %s88
      %p90 = scmp.eq.s32.totalorder %s22, 0
      %p91 = por %p89, %p90
      %s92 = ssub.s32 %s16, %s23
      %p93 = scmp.eq.s32.totalorder %s92, 0
      %s95 = sadd.s32 %s94, 1
      %s96 = scalar_select %p93, %s94, %s95
      %p99 = pneg %p93
      %p100 = scmp.eq.s32.totalorder %s16, 1
      %p101 = por %p99, %p100
      %p102 = scmp.ne.s32.totalorder %s94, %s97
      %p103 = scmp.eq.s32.totalorder %s16, 0
      %p104 = por %p102, %p103
      %p105 = scmp.ne.s32.totalorder %s94, %s97
      %p106 = scmp.eq.s32.totalorder %s21, 1
      %p107 = por %p105, %p106
      %p108 = scmp.ne.s32.totalorder %s97, %s98
      %p109 = scmp.eq.s32.totalorder %s21, 0
      %p110 = por %p108, %p109
      %p111 = scmp.ne.s32.totalorder %s97, %s98
      %p112 = scmp.eq.s32.totalorder %s22, 1
      %p113 = por %p111, %p112
      %p115 = scmp.ne.s32.totalorder %s98, %s114
      %p116 = scmp.eq.s32.totalorder %s22, 0
      %p117 = por %p115, %p116
      %p118 = scmp.le.s32.totalorder 1, %s16
      %p119 = scmp.lt.s32.totalorder %s16, 3
      %p120 = pnand %p118, %p119
      %p121 = pneg %p120
      // Predicated region
      $region9: #{tpu_custom_call.1} parent=5 // pred_check
        _
      $region10: #{tpu_custom_call.1} parent=5 // pred_check_branch
        %123 = sbr.rel (%p120) target = $region12
      $region11: #{tpu_custom_call.1} parent=5 // pred_region
        %s124 = ssub.s32 %s16, 1
        // Predicated region
        $region13: #{tpu_custom_call.1} parent=11 // pred_check
          %p125 = pneg %p63
        $region14: #{tpu_custom_call.1} parent=11 // pred_check_branch
          %127 = sbr.rel (%p125) target = $region16
        $region15: #{tpu_custom_call.1} parent=11 // pred_region
          %s129 = ssub.s32 256, 256
          %130 = vsyncadd [#allocation6], %s129
          %s131 = sshll.u32 [#allocation5], 4
          %s132 = int_to_ptr.vmem [resolvable:$true] %s131
          %137 = dma.hbm_to_vmem [thread:$0]  %s1, 256, %s132, [#allocation6], 64, 64, 4
        $region16: #{tpu_custom_call.1} parent=11 // pred_fallthru
          _
        // Predicated region
        $region17: #{tpu_custom_call.1} parent=11 // pred_check
          %p138 = pneg %p84
        $region18: #{tpu_custom_call.1} parent=11 // pred_check_branch
          %140 = sbr.rel (%p138) target = $region20
        $region19: #{tpu_custom_call.1} parent=11 // pred_region
          %s142 = ssub.s32 256, 256
          %143 = vsyncadd [#allocation6], %s142
          %s144 = sshll.u32 [#allocation7], 4
          %s145 = int_to_ptr.vmem [resolvable:$true] %s144
          %150 = dma.hbm_to_vmem [thread:$0]  %s2, 256, %s145, [#allocation6], 64, 64, 4
        $region20: #{tpu_custom_call.1} parent=11 // pred_fallthru
          _
      $region12: #{tpu_custom_call.1} parent=5 // pred_fallthru
        _
      %p151 = scmp.lt.s32.totalorder %s16, 2
      // Predicated region
      $region21: #{tpu_custom_call.1} parent=5 // pred_check
        %p152 = pneg %p151
      $region22: #{tpu_custom_call.1} parent=5 // pred_check_branch
        %154 = sbr.rel (%p152) target = $region24
      $region23: #{tpu_custom_call.1} parent=5 // pred_region
        // Predicated region
        $region25: #{tpu_custom_call.1} parent=23 // pred_check
          %p155 = pneg %p36
        $region26: #{tpu_custom_call.1} parent=23 // pred_check_branch
          %157 = sbr.rel (%p155) target = $region28
        $region27: #{tpu_custom_call.1} parent=23 // pred_region
          %s158 = sand.u32 %s26, 1
          %s159 = scalar_lea.sflag [#allocation3], %s158
          %s160 = sand.u32 %s26, 1
          %s161 = smul.addr %s160, 8
          %s162 = scalar_lea.vmem [#allocation2], %s161
          %s164 = ssub.s32 128, 128
          %165 = vsyncadd %s159, %s164
          %s166 = smul.addr %s16, 64
          %s167 = scalar_lea.hbm %s0, %s166
          %s168 = sshll.u32 %s162, 4
          %s169 = int_to_ptr.vmem [resolvable:$true] %s168
          %174 = dma.hbm_to_vmem [thread:$0]  %s167, 128, %s169, %s159, 128, 64, 4
        $region28: #{tpu_custom_call.1} parent=23 // pred_fallthru
          _
      $region24: #{tpu_custom_call.1} parent=5 // pred_fallthru
        _
      %p175 = scmp.le.s32.totalorder 1, %s16
      %p176 = scmp.lt.s32.totalorder %s16, 3
      %p177 = pnand %p175, %p176
      %p178 = pneg %p177
      // Predicated region
      $region29: #{tpu_custom_call.1} parent=5 // pred_check
        _
      $region30: #{tpu_custom_call.1} parent=5 // pred_check_branch
        %180 = sbr.rel (%p177) target = $region32
      $region31: #{tpu_custom_call.1} parent=5 // pred_region
        %s181 = ssub.s32 %s16, 1
        %s182 = sand.u32 %s29, 1
        %s183 = scalar_lea.sflag [#allocation3], %s182
        %s184 = sand.u32 %s29, 1
        %s185 = smul.addr %s184, 8
        %s186 = scalar_lea.vmem [#allocation2], %s185
        // Predicated region
        $region33: #{tpu_custom_call.1} parent=31 // pred_check
          %p187 = pneg %p42
        $region34: #{tpu_custom_call.1} parent=31 // pred_check_branch
          %189 = sbr.rel (%p187) target = $region36
        $region35: #{tpu_custom_call.1} parent=31 // pred_region
          %190 = dma.done %s183, 128
        $region36: #{tpu_custom_call.1} parent=31 // pred_fallthru
          _
        // Predicated region
        $region37: #{tpu_custom_call.1} parent=31 // pred_check
          %p191 = pneg %p63
        $region38: #{tpu_custom_call.1} parent=31 // pred_check_branch
          %193 = sbr.rel (%p191) target = $region40
        $region39: #{tpu_custom_call.1} parent=31 // pred_region
          %194 = dma.done [#allocation6], 256
        $region40: #{tpu_custom_call.1} parent=31 // pred_fallthru
          _
        // Predicated region
        $region41: #{tpu_custom_call.1} parent=31 // pred_check
          %p195 = pneg %p84
        $region42: #{tpu_custom_call.1} parent=31 // pred_check_branch
          %197 = sbr.rel (%p195) target = $region44
        $region43: #{tpu_custom_call.1} parent=31 // pred_region
          %198 = dma.done [#allocation6], 256
        $region44: #{tpu_custom_call.1} parent=31 // pred_fallthru
          _
        %s199 = sand.u32 %s29, 1
        %s200 = scalar_lea.sflag [#allocation3], %s199
        %s201 = sand.u32 %s29, 1
        %s202 = smul.addr %s201, 8
        %s203 = scalar_lea.vmem [#allocation2], %s202
        %p204 = pneg %p42
        %p205 = pneg %p39
        %p206 = pneg %p63
        %p207 = pneg %p60
        %p208 = pneg %p84
        %p209 = pneg %p81
        %p210 = pneg %p110
        %p211 = pneg %p107
        %s212 = sand.u32 %s97, 1
        %s213 = scalar_lea.sflag [#allocation4], %s212
        %s214 = sand.u32 %s97, 1
        %s215 = smul.addr %s214, 8
        %s216 = scalar_lea.vmem [#allocation8], %s215
        %v218 = vld [vmem:[#allocation5] sm:$0xf]
        %v219 = vld [vmem:[#allocation5 + $0x4] sm:$0xf]
        %v220 = vld [vmem:[#allocation5 + $0x8] sm:$0xf]
        %v221 = vld [vmem:[#allocation5 + $0xc] sm:$0xf]
        %v222 = vld [vmem:[#allocation7] sm:$0xf]
        %v223 = vld [vmem:[#allocation7 + $0x4] sm:$0xf]
        %v224 = vld [vmem:[#allocation7 + $0x8] sm:$0xf]
        %v225 = vld [vmem:[#allocation7 + $0xc] sm:$0xf]
        %v226 = vld [vmem:[%s186] sm:$0xf]
        %v227 = vld [vmem:[%s186 + $0x4] sm:$0xf]
        %v230 = vunpack.c.l.b16 %v226
        %v231 = vunpack.c.l.b16 %v227
        %v232 = vpack.c.b16 %v231, %v230
        %v237 = vunpack.c.l.b16 %v218
        %v238 = vunpack.c.l.b16 %v219
        %v239 = vunpack.c.l.b16 %v220
        %v240 = vunpack.c.l.b16 %v221
        %v241 = vpack.c.b16 %v238, %v237
        %v242 = vpack.c.b16 %v240, %v239
        %vm245 = vcmask 261120
        %v247 = vsel %vm245, %v232, 0
        %249 = vmatprep.subr.bf16.mxu0 0
        %250 = vmatpush1.bf16.msra.mxu0 %v241
        %251 = vmatprep.subr.bf16.mxu0 0
        %252 = vmatpush1.bf16.msra.mxu0 %v242
        %253 = vmatprep.subr.bf16.mxu0 0
        %254 = vmatpush1.bf16.msra.mxu0 0
        %255 = vmatprep.subr.bf16.mxu0 0
        %256 = vmatpush1.bf16.msra.mxu0 0
        %257 = vmatprep.subr.bf16.mxu0 0
        %258 = vmatpush1.bf16.msra.mxu0 0
        %259 = vmatprep.subr.bf16.mxu0 0
        %260 = vmatpush1.bf16.msra.mxu0 0
        %261 = vmatprep.subr.bf16.mxu0 0
        %262 = vmatpush1.bf16.msra.mxu0 0
        %263 = vmatprep.subr.bf16.mxu0 0
        %264 = vmatpush1.bf16.msra.mxu0 0
        %265 = vmatprep.subr.bf16.mxu0 0
        %266 = vmatpush1.bf16.msra.mxu0 0
        %267 = vmatprep.subr.bf16.mxu0 0
        %268 = vmatpush1.bf16.msra.mxu0 0
        %269 = vmatprep.subr.bf16.mxu0 0
        %270 = vmatpush1.bf16.msra.mxu0 0
        %271 = vmatprep.subr.bf16.mxu0 0
        %272 = vmatpush1.bf16.msra.mxu0 0
        %273 = vmatprep.subr.bf16.mxu0 0
        %274 = vmatpush1.bf16.msra.mxu0 0
        %275 = vmatprep.subr.bf16.mxu0 0
        %276 = vmatpush1.bf16.msra.mxu0 0
        %277 = vmatprep.subr.bf16.mxu0 0
        %278 = vmatpush1.bf16.msra.mxu0 0
        %279 = vmatprep.subr.bf16.mxu0 0
        %280 = vmatpush1.bf16.msra.mxu0 0
        %281 = vmatprep.mubr.bf16.mxu0 0
        %282 = vmatmul.mubr.bf16.gmra.mrb[0].mxu0 %v247
        %v283 = vpop.f32.mrb[0].mxu0
        %v284 = vadd.f32 0.0, %v283
        %v285 = vpop.f32.mrb[0].mxu0
        %v286 = vpop.f32.mrb[0].mxu0
        %v287 = vadd.f32 0.0, %v286
        %v288 = vpop.f32.mrb[0].mxu0
        %289 = vdwg.mxu0
        %291 = vrot.lane.b32.xlu0 %v284, 120
        %v292 = vpop.permute.xlu0 %291
        %295 = vrot.lane.b32.xlu0 %v287, 120
        %v296 = vpop.permute.xlu0 %295
        %298 = vrot.lane.b32.xlu0 %v284, 112
        %v299 = vpop.permute.xlu0 %298
        %301 = vrot.lane.b32.xlu0 %v287, 112
        %v302 = vpop.permute.xlu0 %301
        %304 = vrot.lane.b32.xlu0 %v284, 104
        %v305 = vpop.permute.xlu0 %304
        %307 = vrot.lane.b32.xlu0 %v287, 104
        %v308 = vpop.permute.xlu0 %307
        %v310 = vpack.c.bf16 %v284, %v284
        %v311 = vpack.c.bf16 %v287, %v287
        %v312 = vpack.c.bf16 %v292, %v292
        %v313 = vpack.c.bf16 %v296, %v296
        %v314 = vpack.c.bf16 %v299, %v299
        %v315 = vpack.c.bf16 %v302, %v302
        %v316 = vpack.c.bf16 %v305, %v305
        %v317 = vpack.c.bf16 %v308, %v308
        %319 = vrot.lane.b32.xlu0 %v311, 96
        %v320 = vpop.permute.xlu0 %319
        %vm321 = vcmask 64512
        %v323 = vsel %vm321, %v310, 0
        %v326 = vsel %vm321, %v320, 0
        %328 = vmatprep.subr.bf16.mxu0 0
        %329 = vmatpush1.bf16.xpose.msra.mxu0 %v326
        %330 = vmatprep.subr.bf16.mxu0 0
        %331 = vmatpush1.bf16.xpose.msra.mxu0 0
        %332 = vmatprep.subr.bf16.mxu0 0
        %333 = vmatpush1.bf16.xpose.msra.mxu0 0
        %334 = vmatprep.subr.bf16.mxu0 0
        %335 = vmatpush1.bf16.xpose.msra.mxu0 0
        %336 = vmatprep.subr.bf16.mxu0 0
        %337 = vmatpush1.bf16.xpose.msra.mxu0 0
        %338 = vmatprep.subr.bf16.mxu0 0
        %339 = vmatpush1.bf16.xpose.msra.mxu0 0
        %340 = vmatprep.subr.bf16.mxu0 0
        %341 = vmatpush1.bf16.xpose.msra.mxu0 0
        %342 = vmatprep.subr.bf16.mxu0 0
        %343 = vmatpush1.bf16.xpose.msra.mxu0 0
        %344 = vmatprep.subr.bf16.mxu0 0
        %345 = vmatpush1.bf16.xpose.msra.mxu0 0
        %346 = vmatprep.subr.bf16.mxu0 0
        %347 = vmatpush1.bf16.xpose.msra.mxu0 0
        %348 = vmatprep.subr.bf16.mxu0 0
        %349 = vmatpush1.bf16.xpose.msra.mxu0 0
        %350 = vmatprep.subr.bf16.mxu0 0
        %351 = vmatpush1.bf16.xpose.msra.mxu0 0
        %352 = vmatprep.subr.bf16.mxu0 0
        %353 = vmatpush1.bf16.xpose.msra.mxu0 0
        %354 = vmatprep.subr.bf16.mxu0 0
        %355 = vmatpush1.bf16.xpose.msra.mxu0 0
        %356 = vmatprep.subr.bf16.mxu0 0
        %357 = vmatpush1.bf16.xpose.msra.mxu0 0
        %358 = vmatprep.subr.bf16.mxu0 0
        %359 = vmatpush1.bf16.xpose.msra.mxu0 0
        %360 = vmatprep.mubr.bf16.mxu0 0
        %361 = vmatmul.mubr.bf16.gmra.mrb[0].mxu0 %v323
        %v362 = vpop.f32.mrb[0].mxu0
        %v363 = vadd.f32 0.0, %v362
        %v364 = vpop.f32.mrb[0].mxu0
        %v365 = vpop.f32.mrb[0].mxu0
        %v366 = vpop.f32.mrb[0].mxu0
        %367 = vdwg.mxu0
        %369 = vrot.lane.b32.xlu0 %v310, 96
        %v370 = vpop.permute.xlu0 %369
        %v372 = vsel %vm321, %v311, 0
        %v375 = vsel %vm321, %v370, 0
        %377 = vmatprep.subr.bf16.mxu0 0
        %378 = vmatpush1.bf16.xpose.msra.mxu0 %v375
        %379 = vmatprep.subr.bf16.mxu0 0
        %380 = vmatpush1.bf16.xpose.msra.mxu0 0
        %381 = vmatprep.subr.bf16.mxu0 0
        %382 = vmatpush1.bf16.xpose.msra.mxu0 0
        %383 = vmatprep.subr.bf16.mxu0 0
        %384 = vmatpush1.bf16.xpose.msra.mxu0 0
        %385 = vmatprep.subr.bf16.mxu0 0
        %386 = vmatpush1.bf16.xpose.msra.mxu0 0
        %387 = vmatprep.subr.bf16.mxu0 0
        %388 = vmatpush1.bf16.xpose.msra.mxu0 0
        %389 = vmatprep.subr.bf16.mxu0 0
        %390 = vmatpush1.bf16.xpose.msra.mxu0 0
        %391 = vmatprep.subr.bf16.mxu0 0
        %392 = vmatpush1.bf16.xpose.msra.mxu0 0
        %393 = vmatprep.subr.bf16.mxu0 0
        %394 = vmatpush1.bf16.xpose.msra.mxu0 0
        %395 = vmatprep.subr.bf16.mxu0 0
        %396 = vmatpush1.bf16.xpose.msra.mxu0 0
        %397 = vmatprep.subr.bf16.mxu0 0
        %398 = vmatpush1.bf16.xpose.msra.mxu0 0
        %399 = vmatprep.subr.bf16.mxu0 0
        %400 = vmatpush1.bf16.xpose.msra.mxu0 0
        %401 = vmatprep.subr.bf16.mxu0 0
        %402 = vmatpush1.bf16.xpose.msra.mxu0 0
        %403 = vmatprep.subr.bf16.mxu0 0
        %404 = vmatpush1.bf16.xpose.msra.mxu0 0
        %405 = vmatprep.subr.bf16.mxu0 0
        %406 = vmatpush1.bf16.xpose.msra.mxu0 0
        %407 = vmatprep.subr.bf16.mxu0 0
        %408 = vmatpush1.bf16.xpose.msra.mxu0 0
        %409 = vmatprep.mubr.bf16.mxu0 0
        %410 = vmatmul.mubr.bf16.gmra.mrb[0].mxu0 %v372
        %v411 = vpop.f32.mrb[0].mxu0
        %v412 = vadd.f32 0.0, %v411
        %v413 = vpop.f32.mrb[0].mxu0
        %v414 = vpop.f32.mrb[0].mxu0
        %v415 = vpop.f32.mrb[0].mxu0
        %416 = vdwg.mxu0
        %418 = vrot.lane.b32.xlu0 %v313, 96
        %v419 = vpop.permute.xlu0 %418
        %v421 = vsel %vm321, %v312, 0
        %v424 = vsel %vm321, %v419, 0
        %426 = vmatprep.subr.bf16.mxu0 0
        %427 = vmatpush1.bf16.xpose.msra.mxu0 %v424
        %428 = vmatprep.subr.bf16.mxu0 0
        %429 = vmatpush1.bf16.xpose.msra.mxu0 0
        %430 = vmatprep.subr.bf16.mxu0 0
        %431 = vmatpush1.bf16.xpose.msra.mxu0 0
        %432 = vmatprep.subr.bf16.mxu0 0
        %433 = vmatpush1.bf16.xpose.msra.mxu0 0
        %434 = vmatprep.subr.bf16.mxu0 0
        %435 = vmatpush1.bf16.xpose.msra.mxu0 0
        %436 = vmatprep.subr.bf16.mxu0 0
        %437 = vmatpush1.bf16.xpose.msra.mxu0 0
        %438 = vmatprep.subr.bf16.mxu0 0
        %439 = vmatpush1.bf16.xpose.msra.mxu0 0
        %440 = vmatprep.subr.bf16.mxu0 0
        %441 = vmatpush1.bf16.xpose.msra.mxu0 0
        %442 = vmatprep.subr.bf16.mxu0 0
        %443 = vmatpush1.bf16.xpose.msra.mxu0 0
        %444 = vmatprep.subr.bf16.mxu0 0
        %445 = vmatpush1.bf16.xpose.msra.mxu0 0
        %446 = vmatprep.subr.bf16.mxu0 0
        %447 = vmatpush1.bf16.xpose.msra.mxu0 0
        %448 = vmatprep.subr.bf16.mxu0 0
        %449 = vmatpush1.bf16.xpose.msra.mxu0 0
        %450 = vmatprep.subr.bf16.mxu0 0
        %451 = vmatpush1.bf16.xpose.msra.mxu0 0
        %452 = vmatprep.subr.bf16.mxu0 0
        %453 = vmatpush1.bf16.xpose.msra.mxu0 0
        %454 = vmatprep.subr.bf16.mxu0 0
        %455 = vmatpush1.bf16.xpose.msra.mxu0 0
        %456 = vmatprep.subr.bf16.mxu0 0
        %457 = vmatpush1.bf16.xpose.msra.mxu0 0
        %458 = vmatprep.mubr.bf16.mxu0 0
        %459 = vmatmul.mubr.bf16.gmra.mrb[0].mxu0 %v421
        %v460 = vpop.f32.mrb[0].mxu0
        %v461 = vadd.f32 0.0, %v460
        %v462 = vpop.f32.mrb[0].mxu0
        %v463 = vpop.f32.mrb[0].mxu0
        %v464 = vpop.f32.mrb[0].mxu0
        %465 = vdwg.mxu0
        %467 = vrot.lane.b32.xlu0 %v312, 96
        %v468 = vpop.permute.xlu0 %467
        %v470 = vsel %vm321, %v313, 0
        %v473 = vsel %vm321, %v468, 0
        %475 = vmatprep.subr.bf16.mxu0 0
        %476 = vmatpush1.bf16.xpose.msra.mxu0 %v473
        %477 = vmatprep.subr.bf16.mxu0 0
        %478 = vmatpush1.bf16.xpose.msra.mxu0 0
        %479 = vmatprep.subr.bf16.mxu0 0
        %480 = vmatpush1.bf16.xpose.msra.mxu0 0
        %481 = vmatprep.subr.bf16.mxu0 0
        %482 = vmatpush1.bf16.xpose.msra.mxu0 0
        %483 = vmatprep.subr.bf16.mxu0 0
        %484 = vmatpush1.bf16.xpose.msra.mxu0 0
        %485 = vmatprep.subr.bf16.mxu0 0
        %486 = vmatpush1.bf16.xpose.msra.mxu0 0
        %487 = vmatprep.subr.bf16.mxu0 0
        %488 = vmatpush1.bf16.xpose.msra.mxu0 0
        %489 = vmatprep.subr.bf16.mxu0 0
        %490 = vmatpush1.bf16.xpose.msra.mxu0 0
        %491 = vmatprep.subr.bf16.mxu0 0
        %492 = vmatpush1.bf16.xpose.msra.mxu0 0
        %493 = vmatprep.subr.bf16.mxu0 0
        %494 = vmatpush1.bf16.xpose.msra.mxu0 0
        %495 = vmatprep.subr.bf16.mxu0 0
        %496 = vmatpush1.bf16.xpose.msra.mxu0 0
        %497 = vmatprep.subr.bf16.mxu0 0
        %498 = vmatpush1.bf16.xpose.msra.mxu0 0
        %499 = vmatprep.subr.bf16.mxu0 0
        %500 = vmatpush1.bf16.xpose.msra.mxu0 0
        %501 = vmatprep.subr.bf16.mxu0 0
        %502 = vmatpush1.bf16.xpose.msra.mxu0 0
        %503 = vmatprep.subr.bf16.mxu0 0
        %504 = vmatpush1.bf16.xpose.msra.mxu0 0
        %505 = vmatprep.subr.bf16.mxu0 0
        %506 = vmatpush1.bf16.xpose.msra.mxu0 0
        %507 = vmatprep.mubr.bf16.mxu0 0
        %508 = vmatmul.mubr.bf16.gmra.mrb[0].mxu0 %v470
        %v509 = vpop.f32.mrb[0].mxu0
        %v510 = vadd.f32 0.0, %v509
        %v511 = vpop.f32.mrb[0].mxu0
        %v512 = vpop.f32.mrb[0].mxu0
        %v513 = vpop.f32.mrb[0].mxu0
        %514 = vdwg.mxu0
        %516 = vrot.lane.b32.xlu0 %v315, 96
        %v517 = vpop.permute.xlu0 %516
        %v519 = vsel %vm321, %v314, 0
        %v522 = vsel %vm321, %v517, 0
        %524 = vmatprep.subr.bf16.mxu0 0
        %525 = vmatpush1.bf16.xpose.msra.mxu0 %v522
        %526 = vmatprep.subr.bf16.mxu0 0
        %527 = vmatpush1.bf16.xpose.msra.mxu0 0
        %528 = vmatprep.subr.bf16.mxu0 0
        %529 = vmatpush1.bf16.xpose.msra.mxu0 0
        %530 = vmatprep.subr.bf16.mxu0 0
        %531 = vmatpush1.bf16.xpose.msra.mxu0 0
        %532 = vmatprep.subr.bf16.mxu0 0
        %533 = vmatpush1.bf16.xpose.msra.mxu0 0
        %534 = vmatprep.subr.bf16.mxu0 0
        %535 = vmatpush1.bf16.xpose.msra.mxu0 0
        %536 = vmatprep.subr.bf16.mxu0 0
        %537 = vmatpush1.bf16.xpose.msra.mxu0 0
        %538 = vmatprep.subr.bf16.mxu0 0
        %539 = vmatpush1.bf16.xpose.msra.mxu0 0
        %540 = vmatprep.subr.bf16.mxu0 0
        %541 = vmatpush1.bf16.xpose.msra.mxu0 0
        %542 = vmatprep.subr.bf16.mxu0 0
        %543 = vmatpush1.bf16.xpose.msra.mxu0 0
        %544 = vmatprep.subr.bf16.mxu0 0
        %545 = vmatpush1.bf16.xpose.msra.mxu0 0
        %546 = vmatprep.subr.bf16.mxu0 0
        %547 = vmatpush1.bf16.xpose.msra.mxu0 0
        %548 = vmatprep.subr.bf16.mxu0 0
        %549 = vmatpush1.bf16.xpose.msra.mxu0 0
        %550 = vmatprep.subr.bf16.mxu0 0
        %551 = vmatpush1.bf16.xpose.msra.mxu0 0
        %552 = vmatprep.subr.bf16.mxu0 0
        %553 = vmatpush1.bf16.xpose.msra.mxu0 0
        %554 = vmatprep.subr.bf16.mxu0 0
        %555 = vmatpush1.bf16.xpose.msra.mxu0 0
        %556 = vmatprep.mubr.bf16.mxu0 0
        %557 = vmatmul.mubr.bf16.gmra.mrb[0].mxu0 %v519
        %v558 = vpop.f32.mrb[0].mxu0
        %v559 = vadd.f32 0.0, %v558
        %v560 = vpop.f32.mrb[0].mxu0
        %v561 = vpop.f32.mrb[0].mxu0
        %v562 = vpop.f32.mrb[0].mxu0
        %563 = vdwg.mxu0
        %565 = vrot.lane.b32.xlu0 %v314, 96
        %v566 = vpop.permute.xlu0 %565
        %v568 = vsel %vm321, %v315, 0
        %v571 = vsel %vm321, %v566, 0
        %573 = vmatprep.subr.bf16.mxu0 0
        %574 = vmatpush1.bf16.xpose.msra.mxu0 %v571
        %575 = vmatprep.subr.bf16.mxu0 0
        %576 = vmatpush1.bf16.xpose.msra.mxu0 0
        %577 = vmatprep.subr.bf16.mxu0 0
        %578 = vmatpush1.bf16.xpose.msra.mxu0 0
        %579 = vmatprep.subr.bf16.mxu0 0
        %580 = vmatpush1.bf16.xpose.msra.mxu0 0
        %581 = vmatprep.subr.bf16.mxu0 0
        %582 = vmatpush1.bf16.xpose.msra.mxu0 0
        %583 = vmatprep.subr.bf16.mxu0 0
        %584 = vmatpush1.bf16.xpose.msra.mxu0 0
        %585 = vmatprep.subr.bf16.mxu0 0
        %586 = vmatpush1.bf16.xpose.msra.mxu0 0
        %587 = vmatprep.subr.bf16.mxu0 0
        %588 = vmatpush1.bf16.xpose.msra.mxu0 0
        %589 = vmatprep.subr.bf16.mxu0 0
        %590 = vmatpush1.bf16.xpose.msra.mxu0 0
        %591 = vmatprep.subr.bf16.mxu0 0
        %592 = vmatpush1.bf16.xpose.msra.mxu0 0
        %593 = vmatprep.subr.bf16.mxu0 0
        %594 = vmatpush1.bf16.xpose.msra.mxu0 0
        %595 = vmatprep.subr.bf16.mxu0 0
        %596 = vmatpush1.bf16.xpose.msra.mxu0 0
        %597 = vmatprep.subr.bf16.mxu0 0
        %598 = vmatpush1.bf16.xpose.msra.mxu0 0
        %599 = vmatprep.subr.bf16.mxu0 0
        %600 = vmatpush1.bf16.xpose.msra.mxu0 0
        %601 = vmatprep.subr.bf16.mxu0 0
        %602 = vmatpush1.bf16.xpose.msra.mxu0 0
        %603 = vmatprep.subr.bf16.mxu0 0
        %604 = vmatpush1.bf16.xpose.msra.mxu0 0
        %605 = vmatprep.mubr.bf16.mxu0 0
        %606 = vmatmul.mubr.bf16.gmra.mrb[0].mxu0 %v568
        %v607 = vpop.f32.mrb[0].mxu0
        %v608 = vadd.f32 0.0, %v607
        %v609 = vpop.f32.mrb[0].mxu0
        %v610 = vpop.f32.mrb[0].mxu0
        %v611 = vpop.f32.mrb[0].mxu0
        %612 = vdwg.mxu0
        %614 = vrot.lane.b32.xlu0 %v317, 96
        %v615 = vpop.permute.xlu0 %614
        %v617 = vsel %vm321, %v316, 0
        %v620 = vsel %vm321, %v615, 0
        %622 = vmatprep.subr.bf16.mxu0 0
        %623 = vmatpush1.bf16.xpose.msra.mxu0 %v620
        %624 = vmatprep.subr.bf16.mxu0 0
        %625 = vmatpush1.bf16.xpose.msra.mxu0 0
        %626 = vmatprep.subr.bf16.mxu0 0
        %627 = vmatpush1.bf16.xpose.msra.mxu0 0
        %628 = vmatprep.subr.bf16.mxu0 0
        %629 = vmatpush1.bf16.xpose.msra.mxu0 0
        %630 = vmatprep.subr.bf16.mxu0 0
        %631 = vmatpush1.bf16.xpose.msra.mxu0 0
        %632 = vmatprep.subr.bf16.mxu0 0
        %633 = vmatpush1.bf16.xpose.msra.mxu0 0
        %634 = vmatprep.subr.bf16.mxu0 0
        %635 = vmatpush1.bf16.xpose.msra.mxu0 0
        %636 = vmatprep.subr.bf16.mxu0 0
        %637 = vmatpush1.bf16.xpose.msra.mxu0 0
        %638 = vmatprep.subr.bf16.mxu0 0
        %639 = vmatpush1.bf16.xpose.msra.mxu0 0
        %640 = vmatprep.subr.bf16.mxu0 0
        %641 = vmatpush1.bf16.xpose.msra.mxu0 0
        %642 = vmatprep.subr.bf16.mxu0 0
        %643 = vmatpush1.bf16.xpose.msra.mxu0 0
        %644 = vmatprep.subr.bf16.mxu0 0
        %645 = vmatpush1.bf16.xpose.msra.mxu0 0
        %646 = vmatprep.subr.bf16.mxu0 0
        %647 = vmatpush1.bf16.xpose.msra.mxu0 0
        %648 = vmatprep.subr.bf16.mxu0 0
        %649 = vmatpush1.bf16.xpose.msra.mxu0 0
        %650 = vmatprep.subr.bf16.mxu0 0
        %651 = vmatpush1.bf16.xpose.msra.mxu0 0
        %652 = vmatprep.subr.bf16.mxu0 0
        %653 = vmatpush1.bf16.xpose.msra.mxu0 0
        %654 = vmatprep.mubr.bf16.mxu0 0
        %655 = vmatmul.mubr.bf16.gmra.mrb[0].mxu0 %v617
        %v656 = vpop.f32.mrb[0].mxu0
        %v657 = vadd.f32 0.0, %v656
        %v658 = vpop.f32.mrb[0].mxu0
        %v659 = vpop.f32.mrb[0].mxu0
        %v660 = vpop.f32.mrb[0].mxu0
        %661 = vdwg.mxu0
        %663 = vrot.lane.b32.xlu0 %v316, 96
        %v664 = vpop.permute.xlu0 %663
        %v666 = vsel %vm321, %v317, 0
        %v669 = vsel %vm321, %v664, 0
        %671 = vmatprep.subr.bf16.mxu0 0
        %672 = vmatpush1.bf16.xpose.msra.mxu0 %v669
        %673 = vmatprep.subr.bf16.mxu0 0
        %674 = vmatpush1.bf16.xpose.msra.mxu0 0
        %675 = vmatprep.subr.bf16.mxu0 0
        %676 = vmatpush1.bf16.xpose.msra.mxu0 0
        %677 = vmatprep.subr.bf16.mxu0 0
        %678 = vmatpush1.bf16.xpose.msra.mxu0 0
        %679 = vmatprep.subr.bf16.mxu0 0
        %680 = vmatpush1.bf16.xpose.msra.mxu0 0
        %681 = vmatprep.subr.bf16.mxu0 0
        %682 = vmatpush1.bf16.xpose.msra.mxu0 0
        %683 = vmatprep.subr.bf16.mxu0 0
        %684 = vmatpush1.bf16.xpose.msra.mxu0 0
        %685 = vmatprep.subr.bf16.mxu0 0
        %686 = vmatpush1.bf16.xpose.msra.mxu0 0
        %687 = vmatprep.subr.bf16.mxu0 0
        %688 = vmatpush1.bf16.xpose.msra.mxu0 0
        %689 = vmatprep.subr.bf16.mxu0 0
        %690 = vmatpush1.bf16.xpose.msra.mxu0 0
        %691 = vmatprep.subr.bf16.mxu0 0
        %692 = vmatpush1.bf16.xpose.msra.mxu0 0
        %693 = vmatprep.subr.bf16.mxu0 0
        %694 = vmatpush1.bf16.xpose.msra.mxu0 0
        %695 = vmatprep.subr.bf16.mxu0 0
        %696 = vmatpush1.bf16.xpose.msra.mxu0 0
        %697 = vmatprep.subr.bf16.mxu0 0
        %698 = vmatpush1.bf16.xpose.msra.mxu0 0
        %699 = vmatprep.subr.bf16.mxu0 0
        %700 = vmatpush1.bf16.xpose.msra.mxu0 0
        %701 = vmatprep.subr.bf16.mxu0 0
        %702 = vmatpush1.bf16.xpose.msra.mxu0 0
        %703 = vmatprep.mubr.bf16.mxu0 0
        %704 = vmatmul.mubr.bf16.gmra.mrb[0].mxu0 %v666
        %v705 = vpop.f32.mrb[0].mxu0
        %v706 = vadd.f32 0.0, %v705
        %v707 = vpop.f32.mrb[0].mxu0
        %v708 = vpop.f32.mrb[0].mxu0
        %v709 = vpop.f32.mrb[0].mxu0
        %710 = vdwg.mxu0
        %v711 = vsel %vm321, %v363, -inf
        %712 = vmax.xlane.f32.xlu0 %v711
        %v713 = vpop.xlane.xlu0 %712
        %v714 = vsel %vm321, %v412, -inf
        %715 = vmax.xlane.f32.xlu0 %v714
        %v716 = vpop.xlane.xlu0 %715
        %v717 = vsel %vm321, %v461, -inf
        %718 = vmax.xlane.f32.xlu0 %v717
        %v719 = vpop.xlane.xlu0 %718
        %v720 = vsel %vm321, %v510, -inf
        %721 = vmax.xlane.f32.xlu0 %v720
        %v722 = vpop.xlane.xlu0 %721
        %v723 = vsel %vm321, %v559, -inf
        %724 = vmax.xlane.f32.xlu0 %v723
        %v725 = vpop.xlane.xlu0 %724
        %v726 = vsel %vm321, %v608, -inf
        %727 = vmax.xlane.f32.xlu0 %v726
        %v728 = vpop.xlane.xlu0 %727
        %v729 = vsel %vm321, %v657, -inf
        %730 = vmax.xlane.f32.xlu0 %v729
        %v731 = vpop.xlane.xlu0 %730
        %v732 = vsel %vm321, %v706, -inf
        %733 = vmax.xlane.f32.xlu0 %v732
        %v734 = vpop.xlane.xlu0 %733
        %v735 = vsub.f32 %v363, %v713
        %v736 = vsub.f32 %v412, %v716
        %v737 = vsub.f32 %v461, %v719
        %v738 = vsub.f32 %v510, %v722
        %v739 = vsub.f32 %v559, %v725
        %v740 = vsub.f32 %v608, %v728
        %v741 = vsub.f32 %v657, %v731
        %v742 = vsub.f32 %v706, %v734
        %v743 = vmul.f32 %v735, 1.442695
        %v744 = vpow.pop %v743
        %v745 = vmul.f32 %v736, 1.442695
        %v746 = vpow.pop %v745
        %v747 = vmul.f32 %v737, 1.442695
        %v748 = vpow.pop %v747
        %v749 = vmul.f32 %v738, 1.442695
        %v750 = vpow.pop %v749
        %v751 = vmul.f32 %v739, 1.442695
        %v752 = vpow.pop %v751
        %v753 = vmul.f32 %v740, 1.442695
        %v754 = vpow.pop %v753
        %v755 = vmul.f32 %v741, 1.442695
        %v756 = vpow.pop %v755
        %v757 = vmul.f32 %v742, 1.442695
        %v758 = vpow.pop %v757
        %v759 = vsel %vm321, %v744, 0.0
        %760 = vadd.xlane.f32.xlu0 %v759
        %v761 = vpop.xlane.xlu0 %760
        %v762 = vsel %vm321, %v746, 0.0
        %763 = vadd.xlane.f32.xlu0 %v762
        %v764 = vpop.xlane.xlu0 %763
        %v765 = vsel %vm321, %v748, 0.0
        %766 = vadd.xlane.f32.xlu0 %v765
        %v767 = vpop.xlane.xlu0 %766
        %v768 = vsel %vm321, %v750, 0.0
        %769 = vadd.xlane.f32.xlu0 %v768
        %v770 = vpop.xlane.xlu0 %769
        %v771 = vsel %vm321, %v752, 0.0
        %772 = vadd.xlane.f32.xlu0 %v771
        %v773 = vpop.xlane.xlu0 %772
        %v774 = vsel %vm321, %v754, 0.0
        %775 = vadd.xlane.f32.xlu0 %v774
        %v776 = vpop.xlane.xlu0 %775
        %v777 = vsel %vm321, %v756, 0.0
        %778 = vadd.xlane.f32.xlu0 %v777
        %v779 = vpop.xlane.xlu0 %778
        %v780 = vsel %vm321, %v758, 0.0
        %781 = vadd.xlane.f32.xlu0 %v780
        %v782 = vpop.xlane.xlu0 %781
        %v783 = vrcp.pop %v761
        %v784 = vrcp.pop %v764
        %v785 = vrcp.pop %v767
        %v786 = vrcp.pop %v770
        %v787 = vrcp.pop %v773
        %v788 = vrcp.pop %v776
        %v789 = vrcp.pop %v779
        %v790 = vrcp.pop %v782
        %v791 = vmul.f32 %v744, %v783
        %v792 = vmul.f32 %v746, %v784
        %v793 = vmul.f32 %v748, %v785
        %v794 = vmul.f32 %v750, %v786
        %v795 = vmul.f32 %v752, %v787
        %v796 = vmul.f32 %v754, %v788
        %v797 = vmul.f32 %v756, %v789
        %v798 = vmul.f32 %v758, %v790
        %v799 = vpack.c.bf16 %v791, %v791
        %v800 = vpack.c.bf16 %v792, %v792
        %v801 = vpack.c.bf16 %v793, %v793
        %v802 = vpack.c.bf16 %v794, %v794
        %v803 = vpack.c.bf16 %v795, %v795
        %v804 = vpack.c.bf16 %v796, %v796
        %v805 = vpack.c.bf16 %v797, %v797
        %v806 = vpack.c.bf16 %v798, %v798
        %807 = vrot.lane.b32.xlu0 %v310, 64
        %v808 = vpop.permute.xlu0 %807
        %v810 = vsel %vm321, %v799, 0
        %vm812 = vcmask 1043456
        %v814 = vsel %vm812, %v808, 0
        %816 = vmatprep.subr.bf16.mxu0 0
        %817 = vmatpush1.bf16.msra.mxu0 %v814
        %818 = vmatprep.subr.bf16.mxu0 0
        %819 = vmatpush1.bf16.msra.mxu0 0
        %820 = vmatprep.subr.bf16.mxu0 0
        %821 = vmatpush1.bf16.msra.mxu0 0
        %822 = vmatprep.subr.bf16.mxu0 0
        %823 = vmatpush1.bf16.msra.mxu0 0
        %824 = vmatprep.subr.bf16.mxu0 0
        %825 = vmatpush1.bf16.msra.mxu0 0
        %826 = vmatprep.subr.bf16.mxu0 0
        %827 = vmatpush1.bf16.msra.mxu0 0
        %828 = vmatprep.subr.bf16.mxu0 0
        %829 = vmatpush1.bf16.msra.mxu0 0
        %830 = vmatprep.subr.bf16.mxu0 0
        %831 = vmatpush1.bf16.msra.mxu0 0
        %832 = vmatprep.subr.bf16.mxu0 0
        %833 = vmatpush1.bf16.msra.mxu0 0
        %834 = vmatprep.subr.bf16.mxu0 0
        %835 = vmatpush1.bf16.msra.mxu0 0
        %836 = vmatprep.subr.bf16.mxu0 0
        %837 = vmatpush1.bf16.msra.mxu0 0
        %838 = vmatprep.subr.bf16.mxu0 0
        %839 = vmatpush1.bf16.msra.mxu0 0
        %840 = vmatprep.subr.bf16.mxu0 0
        %841 = vmatpush1.bf16.msra.mxu0 0
        %842 = vmatprep.subr.bf16.mxu0 0
        %843 = vmatpush1.bf16.msra.mxu0 0
        %844 = vmatprep.subr.bf16.mxu0 0
        %845 = vmatpush1.bf16.msra.mxu0 0
        %846 = vmatprep.subr.bf16.mxu0 0
        %847 = vmatpush1.bf16.msra.mxu0 0
        %848 = vmatprep.mubr.bf16.mxu0 0
        %849 = vmatmul.mubr.bf16.gmra.mrb[0].mxu0 %v810
        %v850 = vpop.f32.mrb[0].mxu0
        %v851 = vadd.f32 0.0, %v850
        %v852 = vpop.f32.mrb[0].mxu0
        %v853 = vpop.f32.mrb[0].mxu0
        %v854 = vpop.f32.mrb[0].mxu0
        %855 = vdwg.mxu0
        %856 = vrot.lane.b32.xlu0 %v311, 64
        %v857 = vpop.permute.xlu0 %856
        %v859 = vsel %vm321, %v800, 0
        %v862 = vsel %vm812, %v857, 0
        %864 = vmatprep.subr.bf16.mxu0 0
        %865 = vmatpush1.bf16.msra.mxu0 %v862
        %866 = vmatprep.subr.bf16.mxu0 0
        %867 = vmatpush1.bf16.msra.mxu0 0
        %868 = vmatprep.subr.bf16.mxu0 0
        %869 = vmatpush1.bf16.msra.mxu0 0
        %870 = vmatprep.subr.bf16.mxu0 0
        %871 = vmatpush1.bf16.msra.mxu0 0
        %872 = vmatprep.subr.bf16.mxu0 0
        %873 = vmatpush1.bf16.msra.mxu0 0
        %874 = vmatprep.subr.bf16.mxu0 0
        %875 = vmatpush1.bf16.msra.mxu0 0
        %876 = vmatprep.subr.bf16.mxu0 0
        %877 = vmatpush1.bf16.msra.mxu0 0
        %878 = vmatprep.subr.bf16.mxu0 0
        %879 = vmatpush1.bf16.msra.mxu0 0
        %880 = vmatprep.subr.bf16.mxu0 0
        %881 = vmatpush1.bf16.msra.mxu0 0
        %882 = vmatprep.subr.bf16.mxu0 0
        %883 = vmatpush1.bf16.msra.mxu0 0
        %884 = vmatprep.subr.bf16.mxu0 0
        %885 = vmatpush1.bf16.msra.mxu0 0
        %886 = vmatprep.subr.bf16.mxu0 0
        %887 = vmatpush1.bf16.msra.mxu0 0
        %888 = vmatprep.subr.bf16.mxu0 0
        %889 = vmatpush1.bf16.msra.mxu0 0
        %890 = vmatprep.subr.bf16.mxu0 0
        %891 = vmatpush1.bf16.msra.mxu0 0
        %892 = vmatprep.subr.bf16.mxu0 0
        %893 = vmatpush1.bf16.msra.mxu0 0
        %894 = vmatprep.subr.bf16.mxu0 0
        %895 = vmatpush1.bf16.msra.mxu0 0
        %896 = vmatprep.mubr.bf16.mxu0 0
        %897 = vmatmul.mubr.bf16.gmra.mrb[0].mxu0 %v859
        %v898 = vpop.f32.mrb[0].mxu0
        %v899 = vadd.f32 0.0, %v898
        %v900 = vpop.f32.mrb[0].mxu0
        %v901 = vpop.f32.mrb[0].mxu0
        %v902 = vpop.f32.mrb[0].mxu0
        %903 = vdwg.mxu0
        %904 = vrot.lane.b32.xlu0 %v312, 64
        %v905 = vpop.permute.xlu0 %904
        %v907 = vsel %vm321, %v801, 0
        %v910 = vsel %vm812, %v905, 0
        %912 = vmatprep.subr.bf16.mxu0 0
        %913 = vmatpush1.bf16.msra.mxu0 %v910
        %914 = vmatprep.subr.bf16.mxu0 0
        %915 = vmatpush1.bf16.msra.mxu0 0
        %916 = vmatprep.subr.bf16.mxu0 0
        %917 = vmatpush1.bf16.msra.mxu0 0
        %918 = vmatprep.subr.bf16.mxu0 0
        %919 = vmatpush1.bf16.msra.mxu0 0
        %920 = vmatprep.subr.bf16.mxu0 0
        %921 = vmatpush1.bf16.msra.mxu0 0
        %922 = vmatprep.subr.bf16.mxu0 0
        %923 = vmatpush1.bf16.msra.mxu0 0
        %924 = vmatprep.subr.bf16.mxu0 0
        %925 = vmatpush1.bf16.msra.mxu0 0
        %926 = vmatprep.subr.bf16.mxu0 0
        %927 = vmatpush1.bf16.msra.mxu0 0
        %928 = vmatprep.subr.bf16.mxu0 0
        %929 = vmatpush1.bf16.msra.mxu0 0
        %930 = vmatprep.subr.bf16.mxu0 0
        %931 = vmatpush1.bf16.msra.mxu0 0
        %932 = vmatprep.subr.bf16.mxu0 0
        %933 = vmatpush1.bf16.msra.mxu0 0
        %934 = vmatprep.subr.bf16.mxu0 0
        %935 = vmatpush1.bf16.msra.mxu0 0
        %936 = vmatprep.subr.bf16.mxu0 0
        %937 = vmatpush1.bf16.msra.mxu0 0
        %938 = vmatprep.subr.bf16.mxu0 0
        %939 = vmatpush1.bf16.msra.mxu0 0
        %940 = vmatprep.subr.bf16.mxu0 0
        %941 = vmatpush1.bf16.msra.mxu0 0
        %942 = vmatprep.subr.bf16.mxu0 0
        %943 = vmatpush1.bf16.msra.mxu0 0
        %944 = vmatprep.mubr.bf16.mxu0 0
        %945 = vmatmul.mubr.bf16.gmra.mrb[0].mxu0 %v907
        %v946 = vpop.f32.mrb[0].mxu0
        %v947 = vadd.f32 0.0, %v946
        %v948 = vpop.f32.mrb[0].mxu0
        %v949 = vpop.f32.mrb[0].mxu0
        %v950 = vpop.f32.mrb[0].mxu0
        %951 = vdwg.mxu0
        %952 = vrot.lane.b32.xlu0 %v313, 64
        %v953 = vpop.permute.xlu0 %952
        %v955 = vsel %vm321, %v802, 0
        %v958 = vsel %vm812, %v953, 0
        %960 = vmatprep.subr.bf16.mxu0 0
        %961 = vmatpush1.bf16.msra.mxu0 %v958
        %962 = vmatprep.subr.bf16.mxu0 0
        %963 = vmatpush1.bf16.msra.mxu0 0
        %964 = vmatprep.subr.bf16.mxu0 0
        %965 = vmatpush1.bf16.msra.mxu0 0
        %966 = vmatprep.subr.bf16.mxu0 0
        %967 = vmatpush1.bf16.msra.mxu0 0
        %968 = vmatprep.subr.bf16.mxu0 0
        %969 = vmatpush1.bf16.msra.mxu0 0
        %970 = vmatprep.subr.bf16.mxu0 0
        %971 = vmatpush1.bf16.msra.mxu0 0
        %972 = vmatprep.subr.bf16.mxu0 0
        %973 = vmatpush1.bf16.msra.mxu0 0
        %974 = vmatprep.subr.bf16.mxu0 0
        %975 = vmatpush1.bf16.msra.mxu0 0
        %976 = vmatprep.subr.bf16.mxu0 0
        %977 = vmatpush1.bf16.msra.mxu0 0
        %978 = vmatprep.subr.bf16.mxu0 0
        %979 = vmatpush1.bf16.msra.mxu0 0
        %980 = vmatprep.subr.bf16.mxu0 0
        %981 = vmatpush1.bf16.msra.mxu0 0
        %982 = vmatprep.subr.bf16.mxu0 0
        %983 = vmatpush1.bf16.msra.mxu0 0
        %984 = vmatprep.subr.bf16.mxu0 0
        %985 = vmatpush1.bf16.msra.mxu0 0
        %986 = vmatprep.subr.bf16.mxu0 0
        %987 = vmatpush1.bf16.msra.mxu0 0
        %988 = vmatprep.subr.bf16.mxu0 0
        %989 = vmatpush1.bf16.msra.mxu0 0
        %990 = vmatprep.subr.bf16.mxu0 0
        %991 = vmatpush1.bf16.msra.mxu0 0
        %992 = vmatprep.mubr.bf16.mxu0 0
        %993 = vmatmul.mubr.bf16.gmra.mrb[0].mxu0 %v955
        %v994 = vpop.f32.mrb[0].mxu0
        %v995 = vadd.f32 0.0, %v994
        %v996 = vpop.f32.mrb[0].mxu0
        %v997 = vpop.f32.mrb[0].mxu0
        %v998 = vpop.f32.mrb[0].mxu0
        %999 = vdwg.mxu0
        %1000 = vrot.lane.b32.xlu0 %v314, 64
        %v1001 = vpop.permute.xlu0 %1000
        %v1003 = vsel %vm321, %v803, 0
        %v1006 = vsel %vm812, %v1001, 0
        %1008 = vmatprep.subr.bf16.mxu0 0
        %1009 = vmatpush1.bf16.msra.mxu0 %v1006
        %1010 = vmatprep.subr.bf16.mxu0 0
        %1011 = vmatpush1.bf16.msra.mxu0 0
        %1012 = vmatprep.subr.bf16.mxu0 0
        %1013 = vmatpush1.bf16.msra.mxu0 0
        %1014 = vmatprep.subr.bf16.mxu0 0
        %1015 = vmatpush1.bf16.msra.mxu0 0
        %1016 = vmatprep.subr.bf16.mxu0 0
        %1017 = vmatpush1.bf16.msra.mxu0 0
        %1018 = vmatprep.subr.bf16.mxu0 0
        %1019 = vmatpush1.bf16.msra.mxu0 0
        %1020 = vmatprep.subr.bf16.mxu0 0
        %1021 = vmatpush1.bf16.msra.mxu0 0
        %1022 = vmatprep.subr.bf16.mxu0 0
        %1023 = vmatpush1.bf16.msra.mxu0 0
        %1024 = vmatprep.subr.bf16.mxu0 0
        %1025 = vmatpush1.bf16.msra.mxu0 0
        %1026 = vmatprep.subr.bf16.mxu0 0
        %1027 = vmatpush1.bf16.msra.mxu0 0
        %1028 = vmatprep.subr.bf16.mxu0 0
        %1029 = vmatpush1.bf16.msra.mxu0 0
        %1030 = vmatprep.subr.bf16.mxu0 0
        %1031 = vmatpush1.bf16.msra.mxu0 0
        %1032 = vmatprep.subr.bf16.mxu0 0
        %1033 = vmatpush1.bf16.msra.mxu0 0
        %1034 = vmatprep.subr.bf16.mxu0 0
        %1035 = vmatpush1.bf16.msra.mxu0 0
        %1036 = vmatprep.subr.bf16.mxu0 0
        %1037 = vmatpush1.bf16.msra.mxu0 0
        %1038 = vmatprep.subr.bf16.mxu0 0
        %1039 = vmatpush1.bf16.msra.mxu0 0
        %1040 = vmatprep.mubr.bf16.mxu0 0
        %1041 = vmatmul.mubr.bf16.gmra.mrb[0].mxu0 %v1003
        %v1042 = vpop.f32.mrb[0].mxu0
        %v1043 = vadd.f32 0.0, %v1042
        %v1044 = vpop.f32.mrb[0].mxu0
        %v1045 = vpop.f32.mrb[0].mxu0
        %v1046 = vpop.f32.mrb[0].mxu0
        %1047 = vdwg.mxu0
        %1048 = vrot.lane.b32.xlu0 %v315, 64
        %v1049 = vpop.permute.xlu0 %1048
        %v1051 = vsel %vm321, %v804, 0
        %v1054 = vsel %vm812, %v1049, 0
        %1056 = vmatprep.subr.bf16.mxu0 0
        %1057 = vmatpush1.bf16.msra.mxu0 %v1054
        %1058 = vmatprep.subr.bf16.mxu0 0
        %1059 = vmatpush1.bf16.msra.mxu0 0
        %1060 = vmatprep.subr.bf16.mxu0 0
        %1061 = vmatpush1.bf16.msra.mxu0 0
        %1062 = vmatprep.subr.bf16.mxu0 0
        %1063 = vmatpush1.bf16.msra.mxu0 0
        %1064 = vmatprep.subr.bf16.mxu0 0
        %1065 = vmatpush1.bf16.msra.mxu0 0
        %1066 = vmatprep.subr.bf16.mxu0 0
        %1067 = vmatpush1.bf16.msra.mxu0 0
        %1068 = vmatprep.subr.bf16.mxu0 0
        %1069 = vmatpush1.bf16.msra.mxu0 0
        %1070 = vmatprep.subr.bf16.mxu0 0
        %1071 = vmatpush1.bf16.msra.mxu0 0
        %1072 = vmatprep.subr.bf16.mxu0 0
        %1073 = vmatpush1.bf16.msra.mxu0 0
        %1074 = vmatprep.subr.bf16.mxu0 0
        %1075 = vmatpush1.bf16.msra.mxu0 0
        %1076 = vmatprep.subr.bf16.mxu0 0
        %1077 = vmatpush1.bf16.msra.mxu0 0
        %1078 = vmatprep.subr.bf16.mxu0 0
        %1079 = vmatpush1.bf16.msra.mxu0 0
        %1080 = vmatprep.subr.bf16.mxu0 0
        %1081 = vmatpush1.bf16.msra.mxu0 0
        %1082 = vmatprep.subr.bf16.mxu0 0
        %1083 = vmatpush1.bf16.msra.mxu0 0
        %1084 = vmatprep.subr.bf16.mxu0 0
        %1085 = vmatpush1.bf16.msra.mxu0 0
        %1086 = vmatprep.subr.bf16.mxu0 0
        %1087 = vmatpush1.bf16.msra.mxu0 0
        %1088 = vmatprep.mubr.bf16.mxu0 0
        %1089 = vmatmul.mubr.bf16.gmra.mrb[0].mxu0 %v1051
        %v1090 = vpop.f32.mrb[0].mxu0
        %v1091 = vadd.f32 0.0, %v1090
        %v1092 = vpop.f32.mrb[0].mxu0
        %v1093 = vpop.f32.mrb[0].mxu0
        %v1094 = vpop.f32.mrb[0].mxu0
        %1095 = vdwg.mxu0
        %1096 = vrot.lane.b32.xlu0 %v316, 64
        %v1097 = vpop.permute.xlu0 %1096
        %v1099 = vsel %vm321, %v805, 0
        %v1102 = vsel %vm812, %v1097, 0
        %1104 = vmatprep.subr.bf16.mxu0 0
        %1105 = vmatpush1.bf16.msra.mxu0 %v1102
        %1106 = vmatprep.subr.bf16.mxu0 0
        %1107 = vmatpush1.bf16.msra.mxu0 0
        %1108 = vmatprep.subr.bf16.mxu0 0
        %1109 = vmatpush1.bf16.msra.mxu0 0
        %1110 = vmatprep.subr.bf16.mxu0 0
        %1111 = vmatpush1.bf16.msra.mxu0 0
        %1112 = vmatprep.subr.bf16.mxu0 0
        %1113 = vmatpush1.bf16.msra.mxu0 0
        %1114 = vmatprep.subr.bf16.mxu0 0
        %1115 = vmatpush1.bf16.msra.mxu0 0
        %1116 = vmatprep.subr.bf16.mxu0 0
        %1117 = vmatpush1.bf16.msra.mxu0 0
        %1118 = vmatprep.subr.bf16.mxu0 0
        %1119 = vmatpush1.bf16.msra.mxu0 0
        %1120 = vmatprep.subr.bf16.mxu0 0
        %1121 = vmatpush1.bf16.msra.mxu0 0
        %1122 = vmatprep.subr.bf16.mxu0 0
        %1123 = vmatpush1.bf16.msra.mxu0 0
        %1124 = vmatprep.subr.bf16.mxu0 0
        %1125 = vmatpush1.bf16.msra.mxu0 0
        %1126 = vmatprep.subr.bf16.mxu0 0
        %1127 = vmatpush1.bf16.msra.mxu0 0
        %1128 = vmatprep.subr.bf16.mxu0 0
        %1129 = vmatpush1.bf16.msra.mxu0 0
        %1130 = vmatprep.subr.bf16.mxu0 0
        %1131 = vmatpush1.bf16.msra.mxu0 0
        %1132 = vmatprep.subr.bf16.mxu0 0
        %1133 = vmatpush1.bf16.msra.mxu0 0
        %1134 = vmatprep.subr.bf16.mxu0 0
        %1135 = vmatpush1.bf16.msra.mxu0 0
        %1136 = vmatprep.mubr.bf16.mxu0 0
        %1137 = vmatmul.mubr.bf16.gmra.mrb[0].mxu0 %v1099
        %v1138 = vpop.f32.mrb[0].mxu0
        %v1139 = vadd.f32 0.0, %v1138
        %v1140 = vpop.f32.mrb[0].mxu0
        %v1141 = vpop.f32.mrb[0].mxu0
        %v1142 = vpop.f32.mrb[0].mxu0
        %1143 = vdwg.mxu0
        %1144 = vrot.lane.b32.xlu0 %v317, 64
        %v1145 = vpop.permute.xlu0 %1144
        %v1147 = vsel %vm321, %v806, 0
        %v1150 = vsel %vm812, %v1145, 0
        %1152 = vmatprep.subr.bf16.mxu0 0
        %1153 = vmatpush1.bf16.msra.mxu0 %v1150
        %1154 = vmatprep.subr.bf16.mxu0 0
        %1155 = vmatpush1.bf16.msra.mxu0 0
        %1156 = vmatprep.subr.bf16.mxu0 0
        %1157 = vmatpush1.bf16.msra.mxu0 0
        %1158 = vmatprep.subr.bf16.mxu0 0
        %1159 = vmatpush1.bf16.msra.mxu0 0
        %1160 = vmatprep.subr.bf16.mxu0 0
        %1161 = vmatpush1.bf16.msra.mxu0 0
        %1162 = vmatprep.subr.bf16.mxu0 0
        %1163 = vmatpush1.bf16.msra.mxu0 0
        %1164 = vmatprep.subr.bf16.mxu0 0
        %1165 = vmatpush1.bf16.msra.mxu0 0
        %1166 = vmatprep.subr.bf16.mxu0 0
        %1167 = vmatpush1.bf16.msra.mxu0 0
        %1168 = vmatprep.subr.bf16.mxu0 0
        %1169 = vmatpush1.bf16.msra.mxu0 0
        %1170 = vmatprep.subr.bf16.mxu0 0
        %1171 = vmatpush1.bf16.msra.mxu0 0
        %1172 = vmatprep.subr.bf16.mxu0 0
        %1173 = vmatpush1.bf16.msra.mxu0 0
        %1174 = vmatprep.subr.bf16.mxu0 0
        %1175 = vmatpush1.bf16.msra.mxu0 0
        %1176 = vmatprep.subr.bf16.mxu0 0
        %1177 = vmatpush1.bf16.msra.mxu0 0
        %1178 = vmatprep.subr.bf16.mxu0 0
        %1179 = vmatpush1.bf16.msra.mxu0 0
        %1180 = vmatprep.subr.bf16.mxu0 0
        %1181 = vmatpush1.bf16.msra.mxu0 0
        %1182 = vmatprep.subr.bf16.mxu0 0
        %1183 = vmatpush1.bf16.msra.mxu0 0
        %1184 = vmatprep.mubr.bf16.mxu0 0
        %1185 = vmatmul.mubr.bf16.gmra.mrb[0].mxu0 %v1147
        %v1186 = vpop.f32.mrb[0].mxu0
        %v1187 = vadd.f32 0.0, %v1186
        %v1188 = vpop.f32.mrb[0].mxu0
        %v1189 = vpop.f32.mrb[0].mxu0
        %v1190 = vpop.f32.mrb[0].mxu0
        %1191 = vdwg.mxu0
        %v1192 = vsub.f32 %v899, %v851
        %v1193 = vpack.c.bf16 %v1192, %v1192
        %v1194 = vsub.f32 %v995, %v947
        %v1195 = vpack.c.bf16 %v1194, %v1194
        %v1197 = vsel %vm321, %v1195, 0
        %v1200 = vsel %vm812, %v223, 0
        %1202 = vmatprep.subr.bf16.mxu0 0
        %1203 = vmatpush1.bf16.msra.mxu0 %v1200
        %1204 = vmatprep.subr.bf16.mxu0 0
        %1205 = vmatpush1.bf16.msra.mxu0 0
        %1206 = vmatprep.subr.bf16.mxu0 0
        %1207 = vmatpush1.bf16.msra.mxu0 0
        %1208 = vmatprep.subr.bf16.mxu0 0
        %1209 = vmatpush1.bf16.msra.mxu0 0
        %1210 = vmatprep.subr.bf16.mxu0 0
        %1211 = vmatpush1.bf16.msra.mxu0 0
        %1212 = vmatprep.subr.bf16.mxu0 0
        %1213 = vmatpush1.bf16.msra.mxu0 0
        %1214 = vmatprep.subr.bf16.mxu0 0
        %1215 = vmatpush1.bf16.msra.mxu0 0
        %1216 = vmatprep.subr.bf16.mxu0 0
        %1217 = vmatpush1.bf16.msra.mxu0 0
        %1218 = vmatprep.subr.bf16.mxu0 0
        %1219 = vmatpush1.bf16.msra.mxu0 0
        %1220 = vmatprep.subr.bf16.mxu0 0
        %1221 = vmatpush1.bf16.msra.mxu0 0
        %1222 = vmatprep.subr.bf16.mxu0 0
        %1223 = vmatpush1.bf16.msra.mxu0 0
        %1224 = vmatprep.subr.bf16.mxu0 0
        %1225 = vmatpush1.bf16.msra.mxu0 0
        %1226 = vmatprep.subr.bf16.mxu0 0
        %1227 = vmatpush1.bf16.msra.mxu0 0
        %1228 = vmatprep.subr.bf16.mxu0 0
        %1229 = vmatpush1.bf16.msra.mxu0 0
        %1230 = vmatprep.subr.bf16.mxu0 0
        %1231 = vmatpush1.bf16.msra.mxu0 0
        %1232 = vmatprep.subr.bf16.mxu0 0
        %1233 = vmatpush1.bf16.msra.mxu0 0
        %1234 = vmatprep.mubr.bf16.mxu0 0
        %1235 = vmatmul.mubr.bf16.gmra.mrb[0].mxu0 %v1197
        %v1236 = vpop.f32.mrb[0].mxu0
        %v1237 = vadd.f32 0.0, %v1236
        %v1238 = vpop.f32.mrb[0].mxu0
        %v1239 = vpop.f32.mrb[0].mxu0
        %v1240 = vpop.f32.mrb[0].mxu0
        %1241 = vdwg.mxu0
        %v1243 = vsel %vm321, %v1193, 0
        %v1246 = vsel %vm812, %v222, 0
        %1248 = vmatprep.subr.bf16.mxu0 0
        %1249 = vmatpush1.bf16.msra.mxu0 %v1246
        %1250 = vmatprep.subr.bf16.mxu0 0
        %1251 = vmatpush1.bf16.msra.mxu0 0
        %1252 = vmatprep.subr.bf16.mxu0 0
        %1253 = vmatpush1.bf16.msra.mxu0 0
        %1254 = vmatprep.subr.bf16.mxu0 0
        %1255 = vmatpush1.bf16.msra.mxu0 0
        %1256 = vmatprep.subr.bf16.mxu0 0
        %1257 = vmatpush1.bf16.msra.mxu0 0
        %1258 = vmatprep.subr.bf16.mxu0 0
        %1259 = vmatpush1.bf16.msra.mxu0 0
        %1260 = vmatprep.subr.bf16.mxu0 0
        %1261 = vmatpush1.bf16.msra.mxu0 0
        %1262 = vmatprep.subr.bf16.mxu0 0
        %1263 = vmatpush1.bf16.msra.mxu0 0
        %1264 = vmatprep.subr.bf16.mxu0 0
        %1265 = vmatpush1.bf16.msra.mxu0 0
        %1266 = vmatprep.subr.bf16.mxu0 0
        %1267 = vmatpush1.bf16.msra.mxu0 0
        %1268 = vmatprep.subr.bf16.mxu0 0
        %1269 = vmatpush1.bf16.msra.mxu0 0
        %1270 = vmatprep.subr.bf16.mxu0 0
        %1271 = vmatpush1.bf16.msra.mxu0 0
        %1272 = vmatprep.subr.bf16.mxu0 0
        %1273 = vmatpush1.bf16.msra.mxu0 0
        %1274 = vmatprep.subr.bf16.mxu0 0
        %1275 = vmatpush1.bf16.msra.mxu0 0
        %1276 = vmatprep.subr.bf16.mxu0 0
        %1277 = vmatpush1.bf16.msra.mxu0 0
        %1278 = vmatprep.subr.bf16.mxu0 0
        %1279 = vmatpush1.bf16.msra.mxu0 0
        %1280 = vmatprep.mubr.bf16.mxu0 0
        %1281 = vmatmul.mubr.bf16.gmra.mrb[0].mxu0 %v1243
        %v1282 = vpop.f32.mrb[0].mxu0
        %v1283 = vadd.f32 %v1237, %v1282
        %v1284 = vpop.f32.mrb[0].mxu0
        %v1285 = vpop.f32.mrb[0].mxu0
        %v1286 = vpop.f32.mrb[0].mxu0
        %1287 = vdwg.mxu0
        %v1288 = vsub.f32 %v1091, %v1043
        %v1289 = vpack.c.bf16 %v1288, %v1288
        %v1291 = vsel %vm321, %v1289, 0
        %v1294 = vsel %vm812, %v224, 0
        %1296 = vmatprep.subr.bf16.mxu0 0
        %1297 = vmatpush1.bf16.msra.mxu0 %v1294
        %1298 = vmatprep.subr.bf16.mxu0 0
        %1299 = vmatpush1.bf16.msra.mxu0 0
        %1300 = vmatprep.subr.bf16.mxu0 0
        %1301 = vmatpush1.bf16.msra.mxu0 0
        %1302 = vmatprep.subr.bf16.mxu0 0
        %1303 = vmatpush1.bf16.msra.mxu0 0
        %1304 = vmatprep.subr.bf16.mxu0 0
        %1305 = vmatpush1.bf16.msra.mxu0 0
        %1306 = vmatprep.subr.bf16.mxu0 0
        %1307 = vmatpush1.bf16.msra.mxu0 0
        %1308 = vmatprep.subr.bf16.mxu0 0
        %1309 = vmatpush1.bf16.msra.mxu0 0
        %1310 = vmatprep.subr.bf16.mxu0 0
        %1311 = vmatpush1.bf16.msra.mxu0 0
        %1312 = vmatprep.subr.bf16.mxu0 0
        %1313 = vmatpush1.bf16.msra.mxu0 0
        %1314 = vmatprep.subr.bf16.mxu0 0
        %1315 = vmatpush1.bf16.msra.mxu0 0
        %1316 = vmatprep.subr.bf16.mxu0 0
        %1317 = vmatpush1.bf16.msra.mxu0 0
        %1318 = vmatprep.subr.bf16.mxu0 0
        %1319 = vmatpush1.bf16.msra.mxu0 0
        %1320 = vmatprep.subr.bf16.mxu0 0
        %1321 = vmatpush1.bf16.msra.mxu0 0
        %1322 = vmatprep.subr.bf16.mxu0 0
        %1323 = vmatpush1.bf16.msra.mxu0 0
        %1324 = vmatprep.subr.bf16.mxu0 0
        %1325 = vmatpush1.bf16.msra.mxu0 0
        %1326 = vmatprep.subr.bf16.mxu0 0
        %1327 = vmatpush1.bf16.msra.mxu0 0
        %1328 = vmatprep.mubr.bf16.mxu0 0
        %1329 = vmatmul.mubr.bf16.gmra.mrb[0].mxu0 %v1291
        %v1330 = vpop.f32.mrb[0].mxu0
        %v1331 = vadd.f32 0.0, %v1330
        %v1332 = vpop.f32.mrb[0].mxu0
        %v1333 = vpop.f32.mrb[0].mxu0
        %v1334 = vpop.f32.mrb[0].mxu0
        %1335 = vdwg.mxu0
        %v1336 = vadd.f32 %v1283, %v1331
        %v1337 = vsub.f32 %v1187, %v1139
        %v1338 = vpack.c.bf16 %v1337, %v1337
        %v1340 = vsel %vm321, %v1338, 0
        %v1343 = vsel %vm812, %v225, 0
        %1345 = vmatprep.subr.bf16.mxu0 0
        %1346 = vmatpush1.bf16.msra.mxu0 %v1343
        %1347 = vmatprep.subr.bf16.mxu0 0
        %1348 = vmatpush1.bf16.msra.mxu0 0
        %1349 = vmatprep.subr.bf16.mxu0 0
        %1350 = vmatpush1.bf16.msra.mxu0 0
        %1351 = vmatprep.subr.bf16.mxu0 0
        %1352 = vmatpush1.bf16.msra.mxu0 0
        %1353 = vmatprep.subr.bf16.mxu0 0
        %1354 = vmatpush1.bf16.msra.mxu0 0
        %1355 = vmatprep.subr.bf16.mxu0 0
        %1356 = vmatpush1.bf16.msra.mxu0 0
        %1357 = vmatprep.subr.bf16.mxu0 0
        %1358 = vmatpush1.bf16.msra.mxu0 0
        %1359 = vmatprep.subr.bf16.mxu0 0
        %1360 = vmatpush1.bf16.msra.mxu0 0
        %1361 = vmatprep.subr.bf16.mxu0 0
        %1362 = vmatpush1.bf16.msra.mxu0 0
        %1363 = vmatprep.subr.bf16.mxu0 0
        %1364 = vmatpush1.bf16.msra.mxu0 0
        %1365 = vmatprep.subr.bf16.mxu0 0
        %1366 = vmatpush1.bf16.msra.mxu0 0
        %1367 = vmatprep.subr.bf16.mxu0 0
        %1368 = vmatpush1.bf16.msra.mxu0 0
        %1369 = vmatprep.subr.bf16.mxu0 0
        %1370 = vmatpush1.bf16.msra.mxu0 0
        %1371 = vmatprep.subr.bf16.mxu0 0
        %1372 = vmatpush1.bf16.msra.mxu0 0
        %1373 = vmatprep.subr.bf16.mxu0 0
        %1374 = vmatpush1.bf16.msra.mxu0 0
        %1375 = vmatprep.subr.bf16.mxu0 0
        %1376 = vmatpush1.bf16.msra.mxu0 0
        %1377 = vmatprep.mubr.bf16.mxu0 0
        %1378 = vmatmul.mubr.bf16.gmra.mrb[0].mxu0 %v1340
        %v1379 = vpop.f32.mrb[0].mxu0
        %v1380 = vadd.f32 0.0, %v1379
        %v1381 = vpop.f32.mrb[0].mxu0
        %v1382 = vpop.f32.mrb[0].mxu0
        %v1383 = vpop.f32.mrb[0].mxu0
        %1384 = vdwg.mxu0
        %v1385 = vadd.f32 %v1336, %v1380
        %1386 = vst.msk [vmem:[%s216] sm:$0xff] %vm245, %v1385
        %s1387 = sand.u32 %s97, 1
        %s1388 = scalar_lea.sflag [#allocation4], %s1387
        %s1389 = sand.u32 %s97, 1
        %s1390 = smul.addr %s1389, 8
        %s1391 = scalar_lea.vmem [#allocation8], %s1390
        // Predicated region
        $region45: #{tpu_custom_call.1} parent=31 // pred_check
          %p1392 = pneg %p107
        $region46: #{tpu_custom_call.1} parent=31 // pred_check_branch
          %1394 = sbr.rel (%p1392) target = $region48
        $region47: #{tpu_custom_call.1} parent=31 // pred_region
          %s1396 = ssub.s32 128, 128
          %1397 = vsyncadd %s1388, %s1396
          %s1398 = smul.addr %s21, 128
          %s1399 = scalar_lea.hbm %s3, %s1398
          %s1401 = sshll.u32 %s1391, 4
          %s1402 = int_to_ptr.vmem [resolvable:$true] %s1401
          %1404 = dma.vmem_to_hbm [thread:$0]  %s1402, 128, %s1399, %s1388
        $region48: #{tpu_custom_call.1} parent=31 // pred_fallthru
          _
      $region32: #{tpu_custom_call.1} parent=5 // pred_fallthru
        _
      %p1405 = scmp.le.s32.totalorder 2, %s16
      // Predicated region
      $region49: #{tpu_custom_call.1} parent=5 // pred_check
        %p1406 = pneg %p1405
      $region50: #{tpu_custom_call.1} parent=5 // pred_check_branch
        %1408 = sbr.rel (%p1406) target = $region52
      $region51: #{tpu_custom_call.1} parent=5 // pred_region
        %s1409 = ssub.s32 %s16, 2
        // Predicated region
        $region53: #{tpu_custom_call.1} parent=51 // pred_check
          %p1410 = pneg %p113
        $region54: #{tpu_custom_call.1} parent=51 // pred_check_branch
          %1412 = sbr.rel (%p1410) target = $region56
        $region55: #{tpu_custom_call.1} parent=51 // pred_region
          %s1413 = sand.u32 %s98, 1
          %s1414 = scalar_lea.sflag [#allocation4], %s1413
          %s1415 = sand.u32 %s98, 1
          %s1416 = smul.addr %s1415, 8
          %s1417 = scalar_lea.vmem [#allocation8], %s1416
          %1418 = dma.done %s1414, 128
        $region56: #{tpu_custom_call.1} parent=51 // pred_fallthru
          _
      $region52: #{tpu_custom_call.1} parent=5 // pred_fallthru
        _
    $region6: #{tpu_custom_call.1} parent=1 // loop_footer
      %s20 = sadd.s32 1, %s16
    $region7: #{tpu_custom_call.1} parent=1 // loop_footer_branch
      %15 = sbr.rel target = $region3
    $region8: #{tpu_custom_call.1} parent=1 // loop_exit
      _
    %1419 = vsyncpa [#allocation3], 1
    %s1420 = scalar_lea.sflag [#allocation3], 1
    %1421 = vsyncpa %s1420, 1
    %1422 = vsyncpa [#allocation6], 1
    %1423 = vsyncpa [#allocation4], 1
    %s1424 = scalar_lea.sflag [#allocation4], 1
    %1425 = vsyncpa %s1424, 1

</llo_original>
